<compile_context>
chip_gen: v7x
topology: tpu7x:2x2x1
jax: 0.10.0
libtpu: 0.0.40
codegen_flags: <defaults>
</compile_context>

<pallas_src>
import functools

import jax
import jax.numpy as jnp
from jax.experimental import pallas as pl
from jax.experimental.pallas import tpu as pltpu


def _cross_attn_kernel(a_ref, b_ref,
                       wqT_ref, bq_ref, wkvT_ref, bkv_ref,
                       woT_ref, bo_ref,
                       o_ref, *, num_heads):
    Bt, Lq, E = a_ref.shape
    _, Lk, _ = b_ref.shape
    head_dim = E // num_heads

    # Flatten (Bt, L, E) -> (Bt*L, E): leading-dim merge (free reshape), gives
    # the projection matmuls a larger M dimension.
    a2 = a_ref[...].reshape(Bt * Lq, E)
    b2 = b_ref[...].reshape(Bt * Lk, E)

    # Fused (linear_q -> in_proj_q) with the attention scale baked in, and a
    # single fused (linear_k/v -> in_proj_k/v) matmul producing [K | V].
    # Weights were pre-transposed host-side -> plain row-major matmuls.
    q = jnp.dot(a2, wqT_ref[...], preferred_element_type=jnp.float32) + bq_ref[...]
    kv = jnp.dot(b2, wkvT_ref[...], preferred_element_type=jnp.float32) + bkv_ref[...]

    q3 = q.reshape(Bt, Lq, E)
    kv3 = kv.reshape(Bt, Lk, 2 * E)

    # Per-head attention, batched over the Bt batch tile (single batch dim in
    # each einsum -> safe, well-supported lowering). q is pre-scaled, so the
    # scores need no extra multiply.
    head_outs = []
    for h in range(num_heads):
        lo = h * head_dim
        hi = lo + head_dim
        qh = q3[:, :, lo:hi]                                  # (Bt, Lq, hd)
        kh = kv3[:, :, lo:hi]                                 # (Bt, Lk, hd)
        vh = kv3[:, :, E + lo:E + hi]                         # (Bt, Lk, hd)
        s = jnp.einsum("bqd,bkd->bqk", qh, kh,
                       preferred_element_type=jnp.float32)
        m = jnp.max(s, axis=-1, keepdims=True)
        p = jnp.exp(s - m)
        denom = jnp.sum(p, axis=-1, keepdims=True)
        attn = p * pl.reciprocal(denom, approx=True)          # EUP divide
        head_outs.append(jnp.einsum("bqk,bkd->bqd", attn, vh,
                                    preferred_element_type=jnp.float32))

    concat = jnp.concatenate(head_outs, axis=-1).reshape(Bt * Lq, E)
    o = jnp.dot(concat, woT_ref[...], preferred_element_type=jnp.float32) + bo_ref[...]
    o_ref[...] = o.reshape(Bt, Lq, E).astype(o_ref.dtype)


def cross_attention(embedding_A, embedding_B, params, *, num_heads,
                    batch_tile=None):
    """embedding_A: (N, Lq, E), embedding_B: (N, Lk, E) -> (N, Lq, E)."""
    N, Lq, E = embedding_A.shape
    _, Lk, _ = embedding_B.shape
    assert E % num_heads == 0
    head_dim = E // num_heads
    scale = 1.0 / (head_dim ** 0.5)

    in_w = params["in_proj_weight"]        # (3E, E)
    in_b = params["in_proj_bias"]          # (3E,)
    wq_in, wk_in, wv_in = in_w[0:E], in_w[E:2 * E], in_w[2 * E:3 * E]
    bq_in, bk_in, bv_in = in_b[0:E], in_b[E:2 * E], in_b[2 * E:3 * E]

    # Fold outer Linear into MHA in_proj (done once, host-side) and
    # pre-transpose all weights so the kernel never transposes.
    #   q2 = A @ (Wq_in @ Wq).T + (Wq_in @ bq + bq_in)
    # The attention scale is folded into the Q weights (same as PyTorch MHA,
    # which scales q before q @ k^T). K and V weights are fused into one
    # (E, 2E) matrix so the kernel does a single matmul on the B stream.
    wqT = ((wq_in @ params["wq"]).T * scale).astype(jnp.float32)
    bq = ((wq_in @ params["bq"] + bq_in) * scale).reshape(1, E)
    wkT = (wk_in @ params["wk"]).T
    wvT = (wv_in @ params["wv"]).T
    bk = (wk_in @ params["bk"] + bk_in).reshape(1, E)
    bv = (wv_in @ params["bv"] + bv_in).reshape(1, E)
    wkvT = jnp.concatenate([wkT, wvT], axis=1)       # (E, 2E)
    bkv = jnp.concatenate([bk, bv], axis=1)          # (1, 2E)
    woT = params["out_proj_weight"].T
    bo = params["out_proj_bias"].reshape(1, E)

    # Batch tile: target a few hundred flattened rows per grid step.
    if batch_tile is None:
        batch_tile = max(1, min(N, 256 // max(Lq, Lk, 1)))
    Bt = batch_tile
    Np = pl.cdiv(N, Bt) * Bt
    if Np != N:
        padA = jnp.zeros((Np - N, Lq, E), embedding_A.dtype)
        padB = jnp.zeros((Np - N, Lk, E), embedding_B.dtype)
        embedding_A = jnp.concatenate([embedding_A, padA], axis=0)
        embedding_B = jnp.concatenate([embedding_B, padB], axis=0)

    weight_args = (wqT, bq, wkvT, bkv, woT, bo)

    def full_spec(arr):
        nd = arr.ndim
        return pl.BlockSpec(arr.shape, lambda i, _nd=nd: (0,) * _nd)

    kernel = functools.partial(_cross_attn_kernel, num_heads=num_heads)

    out = pl.pallas_call(
        kernel,
        out_shape=jax.ShapeDtypeStruct((Np, Lq, E), embedding_A.dtype),
        grid_spec=pltpu.PrefetchScalarGridSpec(
            num_scalar_prefetch=0,
            grid=(Np // Bt,),
            in_specs=[
                pl.BlockSpec((Bt, Lq, E), lambda i: (i, 0, 0)),
                pl.BlockSpec((Bt, Lk, E), lambda i: (i, 0, 0)),
            ] + [full_spec(w) for w in weight_args],
            out_specs=pl.BlockSpec((Bt, Lq, E), lambda i: (i, 0, 0)),
        ),
        compiler_params=pltpu.CompilerParams(
            dimension_semantics=("parallel",)),
    )(embedding_A, embedding_B, *weight_args)
    return out[:N]


def _reference(embedding_A, embedding_B, params, *, num_heads):
    """Pure-JAX reference with identical math (eval-mode MHA), unfused weights."""
    E = embedding_A.shape[-1]
    q1 = embedding_A @ params["wq"].T + params["bq"]
    k1 = embedding_B @ params["wk"].T + params["bk"]
    v1 = embedding_B @ params["wv"].T + params["bv"]
    in_w, in_b = params["in_proj_weight"], params["in_proj_bias"]
    q2 = q1 @ in_w[0:E].T + in_b[0:E]
    k2 = k1 @ in_w[E:2 * E].T + in_b[E:2 * E]
    v2 = v1 @ in_w[2 * E:].T + in_b[2 * E:]
    N, Lq, _ = q2.shape
    Lk = k2.shape[1]
    hd = E // num_heads
    q2 = q2.reshape(N, Lq, num_heads, hd).transpose(0, 2, 1, 3)
    k2 = k2.reshape(N, Lk, num_heads, hd).transpose(0, 2, 1, 3)
    v2 = v2.reshape(N, Lk, num_heads, hd).transpose(0, 2, 1, 3)
    scores = jnp.einsum("bhqd,bhkd->bhqk", q2, k2) / (hd ** 0.5)
    attn = jax.nn.softmax(scores, axis=-1)
    o = jnp.einsum("bhqk,bhkd->bhqd", attn, v2)
    o = o.transpose(0, 2, 1, 3).reshape(N, Lq, E)
    return o @ params["out_proj_weight"].T + params["out_proj_bias"]


def _make_params(key, embed_dim):
    keys = jax.random.split(key, 10)
    s = 1.0 / (embed_dim ** 0.5)

    def w(k, shape):
        return jax.random.uniform(k, shape, jnp.float32, -s, s)

    return {
        "wq": w(keys[0], (embed_dim, embed_dim)),
        "bq": w(keys[1], (embed_dim,)),
        "wk": w(keys[2], (embed_dim, embed_dim)),
        "bk": w(keys[3], (embed_dim,)),
        "wv": w(keys[4], (embed_dim, embed_dim)),
        "bv": w(keys[5], (embed_dim,)),
        "in_proj_weight": w(keys[6], (3 * embed_dim, embed_dim)),
        "in_proj_bias": jnp.zeros((3 * embed_dim,), jnp.float32),
        "out_proj_weight": w(keys[7], (embed_dim, embed_dim)),
        "out_proj_bias": jnp.zeros((embed_dim,), jnp.float32),
    }


if __name__ == "__main__":
    key = jax.random.PRNGKey(0)
    k_a, k_b, k_p = jax.random.split(key, 3)

    batch, seq_a, seq_b, embed_dim, num_heads = 2, 8, 8, 32, 4
    embedding_A = jax.random.normal(k_a, (batch, seq_a, embed_dim), jnp.float32)
    embedding_B = jax.random.normal(k_b, (batch, seq_b, embed_dim), jnp.float32)
    params = _make_params(k_p, embed_dim)

    out = cross_attention(embedding_A, embedding_B, params, num_heads=num_heads)
    out = jax.block_until_ready(out)

    ref = _reference(embedding_A, embedding_B, params, num_heads=num_heads)
    assert out.shape == (batch, seq_a, embed_dim)
    # Tolerance loosened slightly vs 1e-4: approx (EUP) reciprocal in softmax
    # and host-side weight fusion / q pre-scaling change the rounding path.
    assert jnp.allclose(out, ref, atol=1e-3, rtol=1e-3), "mismatch vs reference"
    print("KERNEL_OK")
</pallas_src>

<mosaic_0001>
module attributes {stable_mosaic.version = 11 : i64} {
  func.func @_cross_attn_kernel(%arg0: i32, %arg1: memref<2x8x32xf32, #tpu.memory_space<vmem>>, %arg2: memref<2x8x32xf32, #tpu.memory_space<vmem>>, %arg3: memref<32x32xf32, #tpu.memory_space<vmem>>, %arg4: memref<1x32xf32, #tpu.memory_space<vmem>>, %arg5: memref<32x64xf32, #tpu.memory_space<vmem>>, %arg6: memref<1x64xf32, #tpu.memory_space<vmem>>, %arg7: memref<32x32xf32, #tpu.memory_space<vmem>>, %arg8: memref<1x32xf32, #tpu.memory_space<vmem>>, %arg9: memref<2x8x32xf32, #tpu.memory_space<vmem>>) attributes {dimension_semantics = [#tpu.dimension_semantics<parallel>], iteration_bounds = array<i64: 1>, scalar_prefetch = 0 : i64, scratch_operands = 0 : i64, tpu.core_type = #tpu.core_type<tc>, window_params = [{transform_indices = @transform_0, window_bounds = array<i64: 2, 8, 32>}, {transform_indices = @transform_1, window_bounds = array<i64: 2, 8, 32>}, {pipeline_mode = #tpu.pipeline_mode<synchronous>, transform_indices = @transform_2, window_bounds = array<i64: 32, 32>}, {pipeline_mode = #tpu.pipeline_mode<synchronous>, transform_indices = @transform_3, window_bounds = array<i64: 1, 32>}, {pipeline_mode = #tpu.pipeline_mode<synchronous>, transform_indices = @transform_4, window_bounds = array<i64: 32, 64>}, {pipeline_mode = #tpu.pipeline_mode<synchronous>, transform_indices = @transform_5, window_bounds = array<i64: 1, 64>}, {pipeline_mode = #tpu.pipeline_mode<synchronous>, transform_indices = @transform_6, window_bounds = array<i64: 32, 32>}, {pipeline_mode = #tpu.pipeline_mode<synchronous>, transform_indices = @transform_7, window_bounds = array<i64: 1, 32>}, {transform_indices = @transform_8, window_bounds = array<i64: 2, 8, 32>}]} {
    %c0 = arith.constant 0 : index
    %c0_0 = arith.constant 0 : index
    %c0_1 = arith.constant 0 : index
    %0 = vector.load %arg1[%c0, %c0_0, %c0_1] : memref<2x8x32xf32, #tpu.memory_space<vmem>>, vector<2x8x32xf32>
    %1 = vector.shape_cast %0 : vector<2x8x32xf32> to vector<16x32xf32>
    %c0_2 = arith.constant 0 : index
    %c0_3 = arith.constant 0 : index
    %c0_4 = arith.constant 0 : index
    %2 = vector.load %arg2[%c0_2, %c0_3, %c0_4] : memref<2x8x32xf32, #tpu.memory_space<vmem>>, vector<2x8x32xf32>
    %3 = vector.shape_cast %2 : vector<2x8x32xf32> to vector<16x32xf32>
    %c0_5 = arith.constant 0 : index
    %c0_6 = arith.constant 0 : index
    %4 = vector.load %arg3[%c0_5, %c0_6] : memref<32x32xf32, #tpu.memory_space<vmem>>, vector<32x32xf32>
    %cst = arith.constant dense<0.000000e+00> : vector<16x32xf32>
    %5 = tpu.matmul %1, %4, %cst {dimension_numbers = #tpu.dot_dimension_numbers<[1], [0], [0], [1], [0, 0, 1, 1], [], []>} : vector<16x32xf32>, vector<32x32xf32>, vector<16x32xf32> -> vector<16x32xf32>
    %c0_7 = arith.constant 0 : index
    %c0_8 = arith.constant 0 : index
    %6 = vector.load %arg4[%c0_7, %c0_8] : memref<1x32xf32, #tpu.memory_space<vmem>>, vector<1x32xf32>
    %7 = vector.broadcast %6 : vector<1x32xf32> to vector<16x32xf32>
    %8 = arith.addf %5, %7 : vector<16x32xf32>
    %c0_9 = arith.constant 0 : index
    %c0_10 = arith.constant 0 : index
    %9 = vector.load %arg5[%c0_9, %c0_10] : memref<32x64xf32, #tpu.memory_space<vmem>>, vector<32x64xf32>
    %cst_11 = arith.constant dense<0.000000e+00> : vector<16x64xf32>
    %10 = tpu.matmul %3, %9, %cst_11 {dimension_numbers = #tpu.dot_dimension_numbers<[1], [0], [0], [1], [0, 0, 1, 1], [], []>} : vector<16x32xf32>, vector<32x64xf32>, vector<16x64xf32> -> vector<16x64xf32>
    %c0_12 = arith.constant 0 : index
    %c0_13 = arith.constant 0 : index
    %11 = vector.load %arg6[%c0_12, %c0_13] : memref<1x64xf32, #tpu.memory_space<vmem>>, vector<1x64xf32>
    %12 = vector.broadcast %11 : vector<1x64xf32> to vector<16x64xf32>
    %13 = arith.addf %10, %12 : vector<16x64xf32>
    %14 = vector.shape_cast %8 : vector<16x32xf32> to vector<2x8x32xf32>
    %15 = vector.shape_cast %13 : vector<16x64xf32> to vector<2x8x64xf32>
    %16 = vector.extract_strided_slice %14 {offsets = [0, 0, 0], sizes = [2, 8, 8], strides = [1, 1, 1]} : vector<2x8x32xf32> to vector<2x8x8xf32>
    %17 = vector.extract_strided_slice %15 {offsets = [0, 0, 0], sizes = [2, 8, 8], strides = [1, 1, 1]} : vector<2x8x64xf32> to vector<2x8x8xf32>
    %18 = vector.extract_strided_slice %15 {offsets = [0, 0, 32], sizes = [2, 8, 8], strides = [1, 1, 1]} : vector<2x8x64xf32> to vector<2x8x8xf32>
    "tpu.trace_start"() <{level = 10 : i32, message = "bqd,bkd->bqk"}> : () -> ()
    %cst_14 = arith.constant dense<0.000000e+00> : vector<2x8x8xf32>
    %19 = tpu.matmul %16, %17, %cst_14 {dimension_numbers = #tpu.dot_dimension_numbers<[2], [2], [1], [1], [0, 0, 0, 1, 1, 1], [0], [0]>} : vector<2x8x8xf32>, vector<2x8x8xf32>, vector<2x8x8xf32> -> vector<2x8x8xf32>
    "tpu.trace_stop"() : () -> ()
    %cst_15 = arith.constant dense<0xFF800000> : vector<2x8xf32>
    %20 = vector.multi_reduction <maximumf>, %19, %cst_15 [2] : vector<2x8x8xf32> to vector<2x8xf32>
    %21 = vector.shape_cast %20 : vector<2x8xf32> to vector<2x8x1xf32>
    %22 = vector.broadcast %21 : vector<2x8x1xf32> to vector<2x8x8xf32>
    %23 = arith.subf %19, %22 : vector<2x8x8xf32>
    %24 = math.exp %23 : vector<2x8x8xf32>
    %cst_16 = arith.constant dense<0.000000e+00> : vector<2x8xf32>
    %25 = vector.multi_reduction <add>, %24, %cst_16 [2] : vector<2x8x8xf32> to vector<2x8xf32>
    %26 = vector.shape_cast %25 : vector<2x8xf32> to vector<2x8x1xf32>
    %27 = tpu.reciprocal %26 {approx = true} : vector<2x8x1xf32> -> vector<2x8x1xf32>
    %28 = vector.broadcast %27 : vector<2x8x1xf32> to vector<2x8x8xf32>
    %29 = arith.mulf %24, %28 : vector<2x8x8xf32>
    "tpu.trace_start"() <{level = 10 : i32, message = "bqk,bkd->bqd"}> : () -> ()
    %cst_17 = arith.constant dense<0.000000e+00> : vector<2x8x8xf32>
    %30 = tpu.matmul %29, %18, %cst_17 {dimension_numbers = #tpu.dot_dimension_numbers<[2], [1], [1], [2], [0, 0, 0, 1, 1, 2], [0], [0]>} : vector<2x8x8xf32>, vector<2x8x8xf32>, vector<2x8x8xf32> -> vector<2x8x8xf32>
    "tpu.trace_stop"() : () -> ()
    %31 = vector.extract_strided_slice %14 {offsets = [0, 0, 8], sizes = [2, 8, 8], strides = [1, 1, 1]} : vector<2x8x32xf32> to vector<2x8x8xf32>
    %32 = vector.extract_strided_slice %15 {offsets = [0, 0, 8], sizes = [2, 8, 8], strides = [1, 1, 1]} : vector<2x8x64xf32> to vector<2x8x8xf32>
    %33 = vector.extract_strided_slice %15 {offsets = [0, 0, 40], sizes = [2, 8, 8], strides = [1, 1, 1]} : vector<2x8x64xf32> to vector<2x8x8xf32>
    "tpu.trace_start"() <{level = 10 : i32, message = "bqd,bkd->bqk"}> : () -> ()
    %cst_18 = arith.constant dense<0.000000e+00> : vector<2x8x8xf32>
    %34 = tpu.matmul %31, %32, %cst_18 {dimension_numbers = #tpu.dot_dimension_numbers<[2], [2], [1], [1], [0, 0, 0, 1, 1, 1], [0], [0]>} : vector<2x8x8xf32>, vector<2x8x8xf32>, vector<2x8x8xf32> -> vector<2x8x8xf32>
    "tpu.trace_stop"() : () -> ()
    %cst_19 = arith.constant dense<0xFF800000> : vector<2x8xf32>
    %35 = vector.multi_reduction <maximumf>, %34, %cst_19 [2] : vector<2x8x8xf32> to vector<2x8xf32>
    %36 = vector.shape_cast %35 : vector<2x8xf32> to vector<2x8x1xf32>
    %37 = vector.broadcast %36 : vector<2x8x1xf32> to vector<2x8x8xf32>
    %38 = arith.subf %34, %37 : vector<2x8x8xf32>
    %39 = math.exp %38 : vector<2x8x8xf32>
    %cst_20 = arith.constant dense<0.000000e+00> : vector<2x8xf32>
    %40 = vector.multi_reduction <add>, %39, %cst_20 [2] : vector<2x8x8xf32> to vector<2x8xf32>
    %41 = vector.shape_cast %40 : vector<2x8xf32> to vector<2x8x1xf32>
    %42 = tpu.reciprocal %41 {approx = true} : vector<2x8x1xf32> -> vector<2x8x1xf32>
    %43 = vector.broadcast %42 : vector<2x8x1xf32> to vector<2x8x8xf32>
    %44 = arith.mulf %39, %43 : vector<2x8x8xf32>
    "tpu.trace_start"() <{level = 10 : i32, message = "bqk,bkd->bqd"}> : () -> ()
    %cst_21 = arith.constant dense<0.000000e+00> : vector<2x8x8xf32>
    %45 = tpu.matmul %44, %33, %cst_21 {dimension_numbers = #tpu.dot_dimension_numbers<[2], [1], [1], [2], [0, 0, 0, 1, 1, 2], [0], [0]>} : vector<2x8x8xf32>, vector<2x8x8xf32>, vector<2x8x8xf32> -> vector<2x8x8xf32>
    "tpu.trace_stop"() : () -> ()
    %46 = vector.extract_strided_slice %14 {offsets = [0, 0, 16], sizes = [2, 8, 8], strides = [1, 1, 1]} : vector<2x8x32xf32> to vector<2x8x8xf32>
    %47 = vector.extract_strided_slice %15 {offsets = [0, 0, 16], sizes = [2, 8, 8], strides = [1, 1, 1]} : vector<2x8x64xf32> to vector<2x8x8xf32>
    %48 = vector.extract_strided_slice %15 {offsets = [0, 0, 48], sizes = [2, 8, 8], strides = [1, 1, 1]} : vector<2x8x64xf32> to vector<2x8x8xf32>
    "tpu.trace_start"() <{level = 10 : i32, message = "bqd,bkd->bqk"}> : () -> ()
    %cst_22 = arith.constant dense<0.000000e+00> : vector<2x8x8xf32>
    %49 = tpu.matmul %46, %47, %cst_22 {dimension_numbers = #tpu.dot_dimension_numbers<[2], [2], [1], [1], [0, 0, 0, 1, 1, 1], [0], [0]>} : vector<2x8x8xf32>, vector<2x8x8xf32>, vector<2x8x8xf32> -> vector<2x8x8xf32>
    "tpu.trace_stop"() : () -> ()
    %cst_23 = arith.constant dense<0xFF800000> : vector<2x8xf32>
    %50 = vector.multi_reduction <maximumf>, %49, %cst_23 [2] : vector<2x8x8xf32> to vector<2x8xf32>
    %51 = vector.shape_cast %50 : vector<2x8xf32> to vector<2x8x1xf32>
    %52 = vector.broadcast %51 : vector<2x8x1xf32> to vector<2x8x8xf32>
    %53 = arith.subf %49, %52 : vector<2x8x8xf32>
    %54 = math.exp %53 : vector<2x8x8xf32>
    %cst_24 = arith.constant dense<0.000000e+00> : vector<2x8xf32>
    %55 = vector.multi_reduction <add>, %54, %cst_24 [2] : vector<2x8x8xf32> to vector<2x8xf32>
    %56 = vector.shape_cast %55 : vector<2x8xf32> to vector<2x8x1xf32>
    %57 = tpu.reciprocal %56 {approx = true} : vector<2x8x1xf32> -> vector<2x8x1xf32>
    %58 = vector.broadcast %57 : vector<2x8x1xf32> to vector<2x8x8xf32>
    %59 = arith.mulf %54, %58 : vector<2x8x8xf32>
    "tpu.trace_start"() <{level = 10 : i32, message = "bqk,bkd->bqd"}> : () -> ()
    %cst_25 = arith.constant dense<0.000000e+00> : vector<2x8x8xf32>
    %60 = tpu.matmul %59, %48, %cst_25 {dimension_numbers = #tpu.dot_dimension_numbers<[2], [1], [1], [2], [0, 0, 0, 1, 1, 2], [0], [0]>} : vector<2x8x8xf32>, vector<2x8x8xf32>, vector<2x8x8xf32> -> vector<2x8x8xf32>
    "tpu.trace_stop"() : () -> ()
    %61 = vector.extract_strided_slice %14 {offsets = [0, 0, 24], sizes = [2, 8, 8], strides = [1, 1, 1]} : vector<2x8x32xf32> to vector<2x8x8xf32>
    %62 = vector.extract_strided_slice %15 {offsets = [0, 0, 24], sizes = [2, 8, 8], strides = [1, 1, 1]} : vector<2x8x64xf32> to vector<2x8x8xf32>
    %63 = vector.extract_strided_slice %15 {offsets = [0, 0, 56], sizes = [2, 8, 8], strides = [1, 1, 1]} : vector<2x8x64xf32> to vector<2x8x8xf32>
    "tpu.trace_start"() <{level = 10 : i32, message = "bqd,bkd->bqk"}> : () -> ()
    %cst_26 = arith.constant dense<0.000000e+00> : vector<2x8x8xf32>
    %64 = tpu.matmul %61, %62, %cst_26 {dimension_numbers = #tpu.dot_dimension_numbers<[2], [2], [1], [1], [0, 0, 0, 1, 1, 1], [0], [0]>} : vector<2x8x8xf32>, vector<2x8x8xf32>, vector<2x8x8xf32> -> vector<2x8x8xf32>
    "tpu.trace_stop"() : () -> ()
    %cst_27 = arith.constant dense<0xFF800000> : vector<2x8xf32>
    %65 = vector.multi_reduction <maximumf>, %64, %cst_27 [2] : vector<2x8x8xf32> to vector<2x8xf32>
    %66 = vector.shape_cast %65 : vector<2x8xf32> to vector<2x8x1xf32>
    %67 = vector.broadcast %66 : vector<2x8x1xf32> to vector<2x8x8xf32>
    %68 = arith.subf %64, %67 : vector<2x8x8xf32>
    %69 = math.exp %68 : vector<2x8x8xf32>
    %cst_28 = arith.constant dense<0.000000e+00> : vector<2x8xf32>
    %70 = vector.multi_reduction <add>, %69, %cst_28 [2] : vector<2x8x8xf32> to vector<2x8xf32>
    %71 = vector.shape_cast %70 : vector<2x8xf32> to vector<2x8x1xf32>
    %72 = tpu.reciprocal %71 {approx = true} : vector<2x8x1xf32> -> vector<2x8x1xf32>
    %73 = vector.broadcast %72 : vector<2x8x1xf32> to vector<2x8x8xf32>
    %74 = arith.mulf %69, %73 : vector<2x8x8xf32>
    "tpu.trace_start"() <{level = 10 : i32, message = "bqk,bkd->bqd"}> : () -> ()
    %cst_29 = arith.constant dense<0.000000e+00> : vector<2x8x8xf32>
    %75 = tpu.matmul %74, %63, %cst_29 {dimension_numbers = #tpu.dot_dimension_numbers<[2], [1], [1], [2], [0, 0, 0, 1, 1, 2], [0], [0]>} : vector<2x8x8xf32>, vector<2x8x8xf32>, vector<2x8x8xf32> -> vector<2x8x8xf32>
    "tpu.trace_stop"() : () -> ()
    %76 = tpu.concatenate %30, %45, %60, %75 in 2 : vector<2x8x8xf32>, vector<2x8x8xf32>, vector<2x8x8xf32>, vector<2x8x8xf32> -> vector<2x8x32xf32>
    %77 = vector.shape_cast %76 : vector<2x8x32xf32> to vector<16x32xf32>
    %c0_30 = arith.constant 0 : index
    %c0_31 = arith.constant 0 : index
    %78 = vector.load %arg7[%c0_30, %c0_31] : memref<32x32xf32, #tpu.memory_space<vmem>>, vector<32x32xf32>
    %cst_32 = arith.constant dense<0.000000e+00> : vector<16x32xf32>
    %79 = tpu.matmul %77, %78, %cst_32 {dimension_numbers = #tpu.dot_dimension_numbers<[1], [0], [0], [1], [0, 0, 1, 1], [], []>} : vector<16x32xf32>, vector<32x32xf32>, vector<16x32xf32> -> vector<16x32xf32>
    %c0_33 = arith.constant 0 : index
    %c0_34 = arith.constant 0 : index
    %80 = vector.load %arg8[%c0_33, %c0_34] : memref<1x32xf32, #tpu.memory_space<vmem>>, vector<1x32xf32>
    %81 = vector.broadcast %80 : vector<1x32xf32> to vector<16x32xf32>
    %82 = arith.addf %79, %81 : vector<16x32xf32>
    %83 = vector.shape_cast %82 : vector<16x32xf32> to vector<2x8x32xf32>
    %c0_35 = arith.constant 0 : index
    %c0_36 = arith.constant 0 : index
    %c0_37 = arith.constant 0 : index
    %84 = vector.load %arg9[%c0_35, %c0_36, %c0_37] : memref<2x8x32xf32, #tpu.memory_space<vmem>>, vector<2x8x32xf32>
    tpu.vector_store %arg9[%c0_35, %c0_36, %c0_37], %83 {strides = array<i32>} : memref<2x8x32xf32, #tpu.memory_space<vmem>>, vector<2x8x32xf32>,
    return
  }
  func.func @transform_0(%arg0: i32) -> (i32, i32, i32) {
    %c0_i32 = arith.constant 0 : i32
    %c0_i32_0 = arith.constant 0 : i32
    %c0_i32_1 = arith.constant 0 : i32
    return %arg0, %c0_i32, %c0_i32_0 : i32, i32, i32
  }
  func.func @transform_1(%arg0: i32) -> (i32, i32, i32) {
    %c0_i32 = arith.constant 0 : i32
    %c0_i32_0 = arith.constant 0 : i32
    %c0_i32_1 = arith.constant 0 : i32
    return %arg0, %c0_i32, %c0_i32_0 : i32, i32, i32
  }
  func.func @transform_2(%arg0: i32) -> (i32, i32) {
    %c0_i32 = arith.constant 0 : i32
    %c0_i32_0 = arith.constant 0 : i32
    %c0_i32_1 = arith.constant 0 : i32
    return %c0_i32, %c0_i32_0 : i32, i32
  }
  func.func @transform_3(%arg0: i32) -> (i32, i32) {
    %c0_i32 = arith.constant 0 : i32
    %c0_i32_0 = arith.constant 0 : i32
    %c0_i32_1 = arith.constant 0 : i32
    return %c0_i32, %c0_i32_0 : i32, i32
  }
  func.func @transform_4(%arg0: i32) -> (i32, i32) {
    %c0_i32 = arith.constant 0 : i32
    %c0_i32_0 = arith.constant 0 : i32
    %c0_i32_1 = arith.constant 0 : i32
    return %c0_i32, %c0_i32_0 : i32, i32
  }
  func.func @transform_5(%arg0: i32) -> (i32, i32) {
    %c0_i32 = arith.constant 0 : i32
    %c0_i32_0 = arith.constant 0 : i32
    %c0_i32_1 = arith.constant 0 : i32
    return %c0_i32, %c0_i32_0 : i32, i32
  }
  func.func @transform_6(%arg0: i32) -> (i32, i32) {
    %c0_i32 = arith.constant 0 : i32
    %c0_i32_0 = arith.constant 0 : i32
    %c0_i32_1 = arith.constant 0 : i32
    return %c0_i32, %c0_i32_0 : i32, i32
  }
  func.func @transform_7(%arg0: i32) -> (i32, i32) {
    %c0_i32 = arith.constant 0 : i32
    %c0_i32_0 = arith.constant 0 : i32
    %c0_i32_1 = arith.constant 0 : i32
    return %c0_i32, %c0_i32_0 : i32, i32
  }
  func.func @transform_8(%arg0: i32) -> (i32, i32, i32) {
    %c0_i32 = arith.constant 0 : i32
    %c0_i32_0 = arith.constant 0 : i32
    %c0_i32_1 = arith.constant 0 : i32
    return %arg0, %c0_i32, %c0_i32_0 : i32, i32, i32
  }
}

</mosaic_0001>

<llo_original>
// kernel: tpu_custom_call.1
$region0: #{tpu_custom_call.1}
  #allocation0 [shape = 'u32[]', space=smem, size = 0x4, offset = 0x4, fixed_abs, tag = 'smem constant byte address 0x4 - core index']
  #allocation1 [shape = 'u32[144,128]{1,0:T(1,128)}', space=vmem, size = 0x12000, scoped, tag = 'internal scratch']
  %s0 = inlined_call_operand.hbm [shape: f32[2,8,32], index: 0, kind: input, shape index: {}]
  %s1 = inlined_call_operand.hbm [shape: f32[2,8,32], index: 1, kind: input, shape index: {}]
  %s2 = inlined_call_operand.hbm [shape: f32[32,32], index: 2, kind: input, shape index: {}]
  %s3 = inlined_call_operand.vmem [shape: f32[1,32], index: 3, kind: input, shape index: {}]
  %s4 = inlined_call_operand.hbm [shape: f32[32,64], index: 4, kind: input, shape index: {}]
  %s5 = inlined_call_operand.vmem [shape: f32[1,64], index: 5, kind: input, shape index: {}]
  %s6 = inlined_call_operand.hbm [shape: f32[32,32], index: 6, kind: input, shape index: {}]
  %s7 = inlined_call_operand.vmem [shape: f32[1,32], index: 7, kind: input, shape index: {}]
  %s8 = inlined_call_operand.hbm [shape: f32[2,8,32], index: 8, kind: output, shape index: {}]
  %s9 = sld [smem:[#allocation0]]
  $region62: #{tpu_custom_call.1} parent=0
    _
  %s11 = ssub.s32 1, %s9
  %s12 = scalar_select 0, %s11, %s9
  $region1: #{tpu_custom_call.1} parent=0
    #allocation2 [shape = 'u8[8192]{0}', space=vmem, size = 0x2000, scoped, tag = 'input window, operand 0, single buffered']
    #allocation3 [shape = 's32[1]{0}', space=sflag, size = 0x4, scoped, tag = 'scoped memory for tpu_custom_call.1']
    #allocation4 [shape = 's32[1]{0}', space=sflag, size = 0x4, scoped, tag = 'scoped memory for tpu_custom_call.1']
    #allocation5 [shape = 'u8[8192]{0}', space=vmem, size = 0x2000, scoped, tag = 'input window, operand 1, single buffered']
    #allocation6 [shape = 's32[1]{0}', space=sflag, size = 0x4, scoped, tag = 'scoped memory for tpu_custom_call.1']
    #allocation7 [shape = 'u8[16384]{0}', space=vmem, size = 0x4000, scoped, tag = 'input window, operand 2, single buffered']
    #allocation8 [shape = 'u8[16384]{0}', space=vmem, size = 0x4000, scoped, tag = 'input window, operand 4, single buffered']
    #allocation9 [shape = 's32[1]{0}', space=sflag, size = 0x4, scoped, tag = 'scoped memory for tpu_custom_call.1']
    #allocation10 [shape = 'u8[16384]{0}', space=vmem, size = 0x4000, scoped, tag = 'input window, operand 6, single buffered']
    #allocation11 [shape = 'u8[8192]{0}', space=vmem, size = 0x2000, scoped, tag = 'output window, operand 0, single buffered']
    %13 = vsyncpa [#allocation3], 0
    %14 = vsyncpa [#allocation6], 0
    %15 = vsyncpa [#allocation9], 0
    %16 = vsyncpa [#allocation4], 0
    // Predicated region
    $region2: #{tpu_custom_call.1} parent=1 // pred_check
      _
    $region3: #{tpu_custom_call.1} parent=1 // pred_check_branch
      %18 = sbr.rel (0) target = $region5
    $region4: #{tpu_custom_call.1} parent=1 // pred_region
      %s20 = ssub.s32 256, 256
      %21 = vsyncadd [#allocation3], %s20
      %s22 = sshll.u32 [#allocation2], 4
      %s23 = int_to_ptr.vmem [resolvable:$true] %s22
      %28 = dma.hbm_to_vmem [thread:$0]  %s0, 256, %s23, [#allocation3], 128, 128, 8
    $region5: #{tpu_custom_call.1} parent=1 // pred_fallthru
      _
    // Predicated region
    $region6: #{tpu_custom_call.1} parent=1 // pred_check
      _
    $region7: #{tpu_custom_call.1} parent=1 // pred_check_branch
      %30 = sbr.rel (0) target = $region9
    $region8: #{tpu_custom_call.1} parent=1 // pred_region
      %s32 = ssub.s32 256, 256
      %33 = vsyncadd [#allocation6], %s32
      %s34 = sshll.u32 [#allocation5], 4
      %s35 = int_to_ptr.vmem [resolvable:$true] %s34
      %40 = dma.hbm_to_vmem [thread:$0]  %s1, 256, %s35, [#allocation6], 128, 128, 8
    $region9: #{tpu_custom_call.1} parent=1 // pred_fallthru
      _
    // Predicated region
    $region10: #{tpu_custom_call.1} parent=1 // pred_check
      _
    $region11: #{tpu_custom_call.1} parent=1 // pred_check_branch
      %42 = sbr.rel (0) target = $region13
    $region12: #{tpu_custom_call.1} parent=1 // pred_region
      %s44 = ssub.s32 512, 512
      %45 = vsyncadd [#allocation6], %s44
      %s46 = sshll.u32 [#allocation7], 4
      %s47 = int_to_ptr.vmem [resolvable:$true] %s46
      %52 = dma.hbm_to_vmem [thread:$0]  %s2, 512, %s47, [#allocation6], 128, 128, 8
    $region13: #{tpu_custom_call.1} parent=1 // pred_fallthru
      _
    // Predicated region
    $region14: #{tpu_custom_call.1} parent=1 // pred_check
      _
    $region15: #{tpu_custom_call.1} parent=1 // pred_check_branch
      %54 = sbr.rel (0) target = $region17
    $region16: #{tpu_custom_call.1} parent=1 // pred_region
      _
    $region17: #{tpu_custom_call.1} parent=1 // pred_fallthru
      _
    // Predicated region
    $region18: #{tpu_custom_call.1} parent=1 // pred_check
      _
    $region19: #{tpu_custom_call.1} parent=1 // pred_check_branch
      %56 = sbr.rel (0) target = $region21
    $region20: #{tpu_custom_call.1} parent=1 // pred_region
      %s58 = ssub.s32 512, 512
      %59 = vsyncadd [#allocation9], %s58
      %s60 = sshll.u32 [#allocation8], 4
      %s61 = int_to_ptr.vmem [resolvable:$true] %s60
      %66 = dma.hbm_to_vmem [thread:$0]  %s4, 512, %s61, [#allocation9], 128, 128, 8
    $region21: #{tpu_custom_call.1} parent=1 // pred_fallthru
      _
    // Predicated region
    $region22: #{tpu_custom_call.1} parent=1 // pred_check
      _
    $region23: #{tpu_custom_call.1} parent=1 // pred_check_branch
      %68 = sbr.rel (0) target = $region25
    $region24: #{tpu_custom_call.1} parent=1 // pred_region
      _
    $region25: #{tpu_custom_call.1} parent=1 // pred_fallthru
      _
    // Predicated region
    $region26: #{tpu_custom_call.1} parent=1 // pred_check
      _
    $region27: #{tpu_custom_call.1} parent=1 // pred_check_branch
      %70 = sbr.rel (0) target = $region29
    $region28: #{tpu_custom_call.1} parent=1 // pred_region
      %s72 = ssub.s32 512, 512
      %73 = vsyncadd [#allocation9], %s72
      %s74 = sshll.u32 [#allocation10], 4
      %s75 = int_to_ptr.vmem [resolvable:$true] %s74
      %80 = dma.hbm_to_vmem [thread:$0]  %s6, 512, %s75, [#allocation9], 128, 128, 8
    $region29: #{tpu_custom_call.1} parent=1 // pred_fallthru
      _
    // Predicated region
    $region30: #{tpu_custom_call.1} parent=1 // pred_check
      _
    $region31: #{tpu_custom_call.1} parent=1 // pred_check_branch
      %82 = sbr.rel (0) target = $region33
    $region32: #{tpu_custom_call.1} parent=1 // pred_region
      _
    $region33: #{tpu_custom_call.1} parent=1 // pred_fallthru
      _
    // Predicated region
    $region34: #{tpu_custom_call.1} parent=1 // pred_check
      _
    $region35: #{tpu_custom_call.1} parent=1 // pred_check_branch
      %84 = sbr.rel (0) target = $region37
    $region36: #{tpu_custom_call.1} parent=1 // pred_region
      %85 = dma.done [#allocation3], 256
    $region37: #{tpu_custom_call.1} parent=1 // pred_fallthru
      _
    // Predicated region
    $region38: #{tpu_custom_call.1} parent=1 // pred_check
      _
    $region39: #{tpu_custom_call.1} parent=1 // pred_check_branch
      %87 = sbr.rel (0) target = $region41
    $region40: #{tpu_custom_call.1} parent=1 // pred_region
      %88 = dma.done [#allocation6], 256
    $region41: #{tpu_custom_call.1} parent=1 // pred_fallthru
      _
    // Predicated region
    $region42: #{tpu_custom_call.1} parent=1 // pred_check
      _
    $region43: #{tpu_custom_call.1} parent=1 // pred_check_branch
      %90 = sbr.rel (0) target = $region45
    $region44: #{tpu_custom_call.1} parent=1 // pred_region
      %91 = dma.done [#allocation6], 512
    $region45: #{tpu_custom_call.1} parent=1 // pred_fallthru
      _
    // Predicated region
    $region46: #{tpu_custom_call.1} parent=1 // pred_check
      _
    $region47: #{tpu_custom_call.1} parent=1 // pred_check_branch
      %93 = sbr.rel (0) target = $region49
    $region48: #{tpu_custom_call.1} parent=1 // pred_region
      %94 = dma.done [#allocation9], 512
    $region49: #{tpu_custom_call.1} parent=1 // pred_fallthru
      _
    // Predicated region
    $region50: #{tpu_custom_call.1} parent=1 // pred_check
      _
    $region51: #{tpu_custom_call.1} parent=1 // pred_check_branch
      %96 = sbr.rel (0) target = $region53
    $region52: #{tpu_custom_call.1} parent=1 // pred_region
      %97 = dma.done [#allocation9], 512
    $region53: #{tpu_custom_call.1} parent=1 // pred_fallthru
      _
    %v98 = vld [vmem:[#allocation2] sm:$0xff]
    %v99 = vld [vmem:[#allocation2 + $0x8] sm:$0xff]
    %v100 = vld [vmem:[#allocation5] sm:$0xff]
    %v101 = vld [vmem:[#allocation5 + $0x8] sm:$0xff]
    %v102 = vld [vmem:[#allocation7] sm:$0xff]
    %v103 = vld [vmem:[#allocation7 + $0x8] sm:$0xff]
    %v104 = vld [vmem:[#allocation7 + $0x10] sm:$0xff]
    %v105 = vld [vmem:[#allocation7 + $0x18] sm:$0xff]
    %v106 = vld [vmem:[%s3] sm:$0x1]
    %v108 = vlaneseq
    %v109 = vshrl.u32 %v108, 7
    %v110 = vsub.s32 0, %v109
    %v111 = vrot.slane %v106, %v110
    %vm113 = vcmask 261120
    %v115 = vsel %vm113, %v98, 0
    %v118 = vsel %vm113, %v99, 0
    %120 = vmatprep.subr.mxu0 0.0
    %121 = vmatpush1.msra.mxu0 %v102
    %122 = vmatprep.subr.mxu0 0.0
    %123 = vmatpush1.msra.mxu0 %v103
    %124 = vmatprep.subr.mxu0 0.0
    %125 = vmatpush1.msra.mxu0 %v104
    %126 = vmatprep.subr.mxu0 0.0
    %127 = vmatpush1.msra.mxu0 %v105
    %128 = vmatprep.subr.mxu0 0.0
    %129 = vmatpush1.msra.mxu0 0.0
    %130 = vmatprep.subr.mxu0 0.0
    %131 = vmatpush1.msra.mxu0 0.0
    %132 = vmatprep.subr.mxu0 0.0
    %133 = vmatpush1.msra.mxu0 0.0
    %134 = vmatprep.subr.mxu0 0.0
    %135 = vmatpush1.msra.mxu0 0.0
    %136 = vmatprep.subr.mxu0 0.0
    %137 = vmatpush1.msra.mxu0 0.0
    %138 = vmatprep.subr.mxu0 0.0
    %139 = vmatpush1.msra.mxu0 0.0
    %140 = vmatprep.subr.mxu0 0.0
    %141 = vmatpush1.msra.mxu0 0.0
    %142 = vmatprep.subr.mxu0 0.0
    %143 = vmatpush1.msra.mxu0 0.0
    %144 = vmatprep.subr.mxu0 0.0
    %145 = vmatpush1.msra.mxu0 0.0
    %146 = vmatprep.subr.mxu0 0.0
    %147 = vmatpush1.msra.mxu0 0.0
    %148 = vmatprep.subr.mxu0 0.0
    %149 = vmatpush1.msra.mxu0 0.0
    %150 = vmatprep.subr.mxu0 0.0
    %151 = vmatpush1.msra.mxu0 0.0
    %152 = vmatprep.subr.mxu0 0.0
    %153 = vmatpush1.msra.mxu0 0.0
    %154 = vmatprep.subr.mxu0 0.0
    %155 = vmatpush1.msra.mxu0 0.0
    %156 = vmatprep.subr.mxu0 0.0
    %157 = vmatpush1.msra.mxu0 0.0
    %158 = vmatprep.subr.mxu0 0.0
    %159 = vmatpush1.msra.mxu0 0.0
    %160 = vmatprep.subr.mxu0 0.0
    %161 = vmatpush1.msra.mxu0 0.0
    %162 = vmatprep.subr.mxu0 0.0
    %163 = vmatpush1.msra.mxu0 0.0
    %164 = vmatprep.subr.mxu0 0.0
    %165 = vmatpush1.msra.mxu0 0.0
    %166 = vmatprep.subr.mxu0 0.0
    %167 = vmatpush1.msra.mxu0 0.0
    %168 = vmatprep.subr.mxu0 0.0
    %169 = vmatpush1.msra.mxu0 0.0
    %170 = vmatprep.subr.mxu0 0.0
    %171 = vmatpush1.msra.mxu0 0.0
    %172 = vmatprep.subr.mxu0 0.0
    %173 = vmatpush1.msra.mxu0 0.0
    %174 = vmatprep.subr.mxu0 0.0
    %175 = vmatpush1.msra.mxu0 0.0
    %176 = vmatprep.subr.mxu0 0.0
    %177 = vmatpush1.msra.mxu0 0.0
    %178 = vmatprep.subr.mxu0 0.0
    %179 = vmatpush1.msra.mxu0 0.0
    %180 = vmatprep.subr.mxu0 0.0
    %181 = vmatpush1.msra.mxu0 0.0
    %182 = vmatprep.subr.mxu0 0.0
    %183 = vmatpush1.msra.mxu0 0.0
    %184 = vmatprep.mubr.f32.mxu0 0.0
    %185 = vmatmul.mubr.f32.gmra.mrb[0].mxu0 %v115
    %v186 = vpop.f32.mrb[0].mxu0
    %v187 = vadd.f32 %v111, %v186
    %v188 = vpop.f32.mrb[0].mxu0
    %189 = vmatprep.mubr.f32.mxu0 0.0
    %190 = vmatmul.mubr.f32.gmra.mrb[0].mxu0 %v118
    %v191 = vpop.f32.mrb[0].mxu0
    %v192 = vadd.f32 %v111, %v191
    %v193 = vpop.f32.mrb[0].mxu0
    %194 = vdwg.mxu0
    %v195 = vld [vmem:[#allocation8] sm:$0xff]
    %v196 = vld [vmem:[#allocation8 + $0x8] sm:$0xff]
    %v197 = vld [vmem:[#allocation8 + $0x10] sm:$0xff]
    %v198 = vld [vmem:[#allocation8 + $0x18] sm:$0xff]
    %v199 = vld [vmem:[%s5] sm:$0x1]
    %v201 = vlaneseq
    %v202 = vshrl.u32 %v201, 7
    %v203 = vsub.s32 0, %v202
    %v204 = vrot.slane %v199, %v203
    %v207 = vsel %vm113, %v100, 0
    %v210 = vsel %vm113, %v101, 0
    %212 = vmatprep.subr.mxu0 0.0
    %213 = vmatpush1.msra.mxu0 %v195
    %214 = vmatprep.subr.mxu0 0.0
    %215 = vmatpush1.msra.mxu0 %v196
    %216 = vmatprep.subr.mxu0 0.0
    %217 = vmatpush1.msra.mxu0 %v197
    %218 = vmatprep.subr.mxu0 0.0
    %219 = vmatpush1.msra.mxu0 %v198
    %220 = vmatprep.subr.mxu0 0.0
    %221 = vmatpush1.msra.mxu0 0.0
    %222 = vmatprep.subr.mxu0 0.0
    %223 = vmatpush1.msra.mxu0 0.0
    %224 = vmatprep.subr.mxu0 0.0
    %225 = vmatpush1.msra.mxu0 0.0
    %226 = vmatprep.subr.mxu0 0.0
    %227 = vmatpush1.msra.mxu0 0.0
    %228 = vmatprep.subr.mxu0 0.0
    %229 = vmatpush1.msra.mxu0 0.0
    %230 = vmatprep.subr.mxu0 0.0
    %231 = vmatpush1.msra.mxu0 0.0
    %232 = vmatprep.subr.mxu0 0.0
    %233 = vmatpush1.msra.mxu0 0.0
    %234 = vmatprep.subr.mxu0 0.0
    %235 = vmatpush1.msra.mxu0 0.0
    %236 = vmatprep.subr.mxu0 0.0
    %237 = vmatpush1.msra.mxu0 0.0
    %238 = vmatprep.subr.mxu0 0.0
    %239 = vmatpush1.msra.mxu0 0.0
    %240 = vmatprep.subr.mxu0 0.0
    %241 = vmatpush1.msra.mxu0 0.0
    %242 = vmatprep.subr.mxu0 0.0
    %243 = vmatpush1.msra.mxu0 0.0
    %244 = vmatprep.subr.mxu0 0.0
    %245 = vmatpush1.msra.mxu0 0.0
    %246 = vmatprep.subr.mxu0 0.0
    %247 = vmatpush1.msra.mxu0 0.0
    %248 = vmatprep.subr.mxu0 0.0
    %249 = vmatpush1.msra.mxu0 0.0
    %250 = vmatprep.subr.mxu0 0.0
    %251 = vmatpush1.msra.mxu0 0.0
    %252 = vmatprep.subr.mxu0 0.0
    %253 = vmatpush1.msra.mxu0 0.0
    %254 = vmatprep.subr.mxu0 0.0
    %255 = vmatpush1.msra.mxu0 0.0
    %256 = vmatprep.subr.mxu0 0.0
    %257 = vmatpush1.msra.mxu0 0.0
    %258 = vmatprep.subr.mxu0 0.0
    %259 = vmatpush1.msra.mxu0 0.0
    %260 = vmatprep.subr.mxu0 0.0
    %261 = vmatpush1.msra.mxu0 0.0
    %262 = vmatprep.subr.mxu0 0.0
    %263 = vmatpush1.msra.mxu0 0.0
    %264 = vmatprep.subr.mxu0 0.0
    %265 = vmatpush1.msra.mxu0 0.0
    %266 = vmatprep.subr.mxu0 0.0
    %267 = vmatpush1.msra.mxu0 0.0
    %268 = vmatprep.subr.mxu0 0.0
    %269 = vmatpush1.msra.mxu0 0.0
    %270 = vmatprep.subr.mxu0 0.0
    %271 = vmatpush1.msra.mxu0 0.0
    %272 = vmatprep.subr.mxu0 0.0
    %273 = vmatpush1.msra.mxu0 0.0
    %274 = vmatprep.subr.mxu0 0.0
    %275 = vmatpush1.msra.mxu0 0.0
    %276 = vmatprep.mubr.f32.mxu0 0.0
    %277 = vmatmul.mubr.f32.gmra.mrb[0].mxu0 %v207
    %v278 = vpop.f32.mrb[0].mxu0
    %v279 = vadd.f32 %v204, %v278
    %v280 = vpop.f32.mrb[0].mxu0
    %281 = vmatprep.mubr.f32.mxu0 0.0
    %282 = vmatmul.mubr.f32.gmra.mrb[0].mxu0 %v210
    %v283 = vpop.f32.mrb[0].mxu0
    %v284 = vadd.f32 %v204, %v283
    %v285 = vpop.f32.mrb[0].mxu0
    %286 = vdwg.mxu0
    %vm287 = vcmask 64512
    %v289 = vsel %vm287, %v187, 0
    %v292 = vsel %vm287, %v279, 0
    %294 = vmatprep.subr.mxu0 0.0
    %295 = vmatpush1.xpose.msra.mxu0 %v292
    %296 = vmatprep.subr.mxu0 0.0
    %297 = vmatpush1.xpose.msra.mxu0 0.0
    %298 = vmatprep.subr.mxu0 0.0
    %299 = vmatpush1.xpose.msra.mxu0 0.0
    %300 = vmatprep.subr.mxu0 0.0
    %301 = vmatpush1.xpose.msra.mxu0 0.0
    %302 = vmatprep.subr.mxu0 0.0
    %303 = vmatpush1.xpose.msra.mxu0 0.0
    %304 = vmatprep.subr.mxu0 0.0
    %305 = vmatpush1.xpose.msra.mxu0 0.0
    %306 = vmatprep.subr.mxu0 0.0
    %307 = vmatpush1.xpose.msra.mxu0 0.0
    %308 = vmatprep.subr.mxu0 0.0
    %309 = vmatpush1.xpose.msra.mxu0 0.0
    %310 = vmatprep.subr.mxu0 0.0
    %311 = vmatpush1.xpose.msra.mxu0 0.0
    %312 = vmatprep.subr.mxu0 0.0
    %313 = vmatpush1.xpose.msra.mxu0 0.0
    %314 = vmatprep.subr.mxu0 0.0
    %315 = vmatpush1.xpose.msra.mxu0 0.0
    %316 = vmatprep.subr.mxu0 0.0
    %317 = vmatpush1.xpose.msra.mxu0 0.0
    %318 = vmatprep.subr.mxu0 0.0
    %319 = vmatpush1.xpose.msra.mxu0 0.0
    %320 = vmatprep.subr.mxu0 0.0
    %321 = vmatpush1.xpose.msra.mxu0 0.0
    %322 = vmatprep.subr.mxu0 0.0
    %323 = vmatpush1.xpose.msra.mxu0 0.0
    %324 = vmatprep.subr.mxu0 0.0
    %325 = vmatpush1.xpose.msra.mxu0 0.0
    %326 = vmatprep.subr.mxu0 0.0
    %327 = vmatpush1.xpose.msra.mxu0 0.0
    %328 = vmatprep.subr.mxu0 0.0
    %329 = vmatpush1.xpose.msra.mxu0 0.0
    %330 = vmatprep.subr.mxu0 0.0
    %331 = vmatpush1.xpose.msra.mxu0 0.0
    %332 = vmatprep.subr.mxu0 0.0
    %333 = vmatpush1.xpose.msra.mxu0 0.0
    %334 = vmatprep.subr.mxu0 0.0
    %335 = vmatpush1.xpose.msra.mxu0 0.0
    %336 = vmatprep.subr.mxu0 0.0
    %337 = vmatpush1.xpose.msra.mxu0 0.0
    %338 = vmatprep.subr.mxu0 0.0
    %339 = vmatpush1.xpose.msra.mxu0 0.0
    %340 = vmatprep.subr.mxu0 0.0
    %341 = vmatpush1.xpose.msra.mxu0 0.0
    %342 = vmatprep.subr.mxu0 0.0
    %343 = vmatpush1.xpose.msra.mxu0 0.0
    %344 = vmatprep.subr.mxu0 0.0
    %345 = vmatpush1.xpose.msra.mxu0 0.0
    %346 = vmatprep.subr.mxu0 0.0
    %347 = vmatpush1.xpose.msra.mxu0 0.0
    %348 = vmatprep.subr.mxu0 0.0
    %349 = vmatpush1.xpose.msra.mxu0 0.0
    %350 = vmatprep.subr.mxu0 0.0
    %351 = vmatpush1.xpose.msra.mxu0 0.0
    %352 = vmatprep.subr.mxu0 0.0
    %353 = vmatpush1.xpose.msra.mxu0 0.0
    %354 = vmatprep.subr.mxu0 0.0
    %355 = vmatpush1.xpose.msra.mxu0 0.0
    %356 = vmatprep.subr.mxu0 0.0
    %357 = vmatpush1.xpose.msra.mxu0 0.0
    %358 = vmatprep.mubr.f32.mxu0 0.0
    %359 = vmatmul.mubr.f32.gmra.mrb[0].mxu0 %v289
    %v360 = vpop.f32.mrb[0].mxu0
    %v361 = vadd.f32 0.0, %v360
    %v362 = vpop.f32.mrb[0].mxu0
    %363 = vdwg.mxu0
    %v365 = vsel %vm287, %v192, 0
    %v368 = vsel %vm287, %v284, 0
    %370 = vmatprep.subr.mxu0 0.0
    %371 = vmatpush1.xpose.msra.mxu0 %v368
    %372 = vmatprep.subr.mxu0 0.0
    %373 = vmatpush1.xpose.msra.mxu0 0.0
    %374 = vmatprep.subr.mxu0 0.0
    %375 = vmatpush1.xpose.msra.mxu0 0.0
    %376 = vmatprep.subr.mxu0 0.0
    %377 = vmatpush1.xpose.msra.mxu0 0.0
    %378 = vmatprep.subr.mxu0 0.0
    %379 = vmatpush1.xpose.msra.mxu0 0.0
    %380 = vmatprep.subr.mxu0 0.0
    %381 = vmatpush1.xpose.msra.mxu0 0.0
    %382 = vmatprep.subr.mxu0 0.0
    %383 = vmatpush1.xpose.msra.mxu0 0.0
    %384 = vmatprep.subr.mxu0 0.0
    %385 = vmatpush1.xpose.msra.mxu0 0.0
    %386 = vmatprep.subr.mxu0 0.0
    %387 = vmatpush1.xpose.msra.mxu0 0.0
    %388 = vmatprep.subr.mxu0 0.0
    %389 = vmatpush1.xpose.msra.mxu0 0.0
    %390 = vmatprep.subr.mxu0 0.0
    %391 = vmatpush1.xpose.msra.mxu0 0.0
    %392 = vmatprep.subr.mxu0 0.0
    %393 = vmatpush1.xpose.msra.mxu0 0.0
    %394 = vmatprep.subr.mxu0 0.0
    %395 = vmatpush1.xpose.msra.mxu0 0.0
    %396 = vmatprep.subr.mxu0 0.0
    %397 = vmatpush1.xpose.msra.mxu0 0.0
    %398 = vmatprep.subr.mxu0 0.0
    %399 = vmatpush1.xpose.msra.mxu0 0.0
    %400 = vmatprep.subr.mxu0 0.0
    %401 = vmatpush1.xpose.msra.mxu0 0.0
    %402 = vmatprep.subr.mxu0 0.0
    %403 = vmatpush1.xpose.msra.mxu0 0.0
    %404 = vmatprep.subr.mxu0 0.0
    %405 = vmatpush1.xpose.msra.mxu0 0.0
    %406 = vmatprep.subr.mxu0 0.0
    %407 = vmatpush1.xpose.msra.mxu0 0.0
    %408 = vmatprep.subr.mxu0 0.0
    %409 = vmatpush1.xpose.msra.mxu0 0.0
    %410 = vmatprep.subr.mxu0 0.0
    %411 = vmatpush1.xpose.msra.mxu0 0.0
    %412 = vmatprep.subr.mxu0 0.0
    %413 = vmatpush1.xpose.msra.mxu0 0.0
    %414 = vmatprep.subr.mxu0 0.0
    %415 = vmatpush1.xpose.msra.mxu0 0.0
    %416 = vmatprep.subr.mxu0 0.0
    %417 = vmatpush1.xpose.msra.mxu0 0.0
    %418 = vmatprep.subr.mxu0 0.0
    %419 = vmatpush1.xpose.msra.mxu0 0.0
    %420 = vmatprep.subr.mxu0 0.0
    %421 = vmatpush1.xpose.msra.mxu0 0.0
    %422 = vmatprep.subr.mxu0 0.0
    %423 = vmatpush1.xpose.msra.mxu0 0.0
    %424 = vmatprep.subr.mxu0 0.0
    %425 = vmatpush1.xpose.msra.mxu0 0.0
    %426 = vmatprep.subr.mxu0 0.0
    %427 = vmatpush1.xpose.msra.mxu0 0.0
    %428 = vmatprep.subr.mxu0 0.0
    %429 = vmatpush1.xpose.msra.mxu0 0.0
    %430 = vmatprep.subr.mxu0 0.0
    %431 = vmatpush1.xpose.msra.mxu0 0.0
    %432 = vmatprep.subr.mxu0 0.0
    %433 = vmatpush1.xpose.msra.mxu0 0.0
    %434 = vmatprep.mubr.f32.mxu0 0.0
    %435 = vmatmul.mubr.f32.gmra.mrb[0].mxu0 %v365
    %v436 = vpop.f32.mrb[0].mxu0
    %v437 = vadd.f32 0.0, %v436
    %v438 = vpop.f32.mrb[0].mxu0
    %439 = vdwg.mxu0
    %v440 = vsel %vm287, %v361, -inf
    %441 = vmax.xlane.f32.xlu0 %v440
    %v442 = vpop.xlane.xlu0 %441
    %v443 = vsel %vm287, %v437, -inf
    %444 = vmax.xlane.f32.xlu0 %v443
    %v445 = vpop.xlane.xlu0 %444
    %v446 = vsub.f32 %v361, %v442
    %v447 = vsub.f32 %v437, %v445
    %v448 = vmul.f32 %v446, 1.442695
    %v449 = vpow.pop %v448
    %v450 = vmul.f32 %v447, 1.442695
    %v451 = vpow.pop %v450
    %v452 = vsel %vm287, %v449, 0.0
    %453 = vadd.xlane.f32.xlu0 %v452
    %v454 = vpop.xlane.xlu0 %453
    %v455 = vsel %vm287, %v451, 0.0
    %456 = vadd.xlane.f32.xlu0 %v455
    %v457 = vpop.xlane.xlu0 %456
    %v458 = vrcp.pop %v454
    %v459 = vrcp.pop %v457
    %v460 = vmul.f32 %v449, %v458
    %v461 = vmul.f32 %v451, %v459
    %462 = vrot.lane.b32.xlu0 %v279, 96
    %v463 = vpop.permute.xlu0 %462
    %v466 = vsel %vm287, %v460, 0
    %468 = vmatprep.subr.mxu0 0.0
    %469 = vmatpush1.msra.mxu0 %v463
    %470 = vmatprep.subr.mxu0 0.0
    %471 = vmatpush1.msra.mxu0 0.0
    %472 = vmatprep.subr.mxu0 0.0
    %473 = vmatpush1.msra.mxu0 0.0
    %474 = vmatprep.subr.mxu0 0.0
    %475 = vmatpush1.msra.mxu0 0.0
    %476 = vmatprep.subr.mxu0 0.0
    %477 = vmatpush1.msra.mxu0 0.0
    %478 = vmatprep.subr.mxu0 0.0
    %479 = vmatpush1.msra.mxu0 0.0
    %480 = vmatprep.subr.mxu0 0.0
    %481 = vmatpush1.msra.mxu0 0.0
    %482 = vmatprep.subr.mxu0 0.0
    %483 = vmatpush1.msra.mxu0 0.0
    %484 = vmatprep.subr.mxu0 0.0
    %485 = vmatpush1.msra.mxu0 0.0
    %486 = vmatprep.subr.mxu0 0.0
    %487 = vmatpush1.msra.mxu0 0.0
    %488 = vmatprep.subr.mxu0 0.0
    %489 = vmatpush1.msra.mxu0 0.0
    %490 = vmatprep.subr.mxu0 0.0
    %491 = vmatpush1.msra.mxu0 0.0
    %492 = vmatprep.subr.mxu0 0.0
    %493 = vmatpush1.msra.mxu0 0.0
    %494 = vmatprep.subr.mxu0 0.0
    %495 = vmatpush1.msra.mxu0 0.0
    %496 = vmatprep.subr.mxu0 0.0
    %497 = vmatpush1.msra.mxu0 0.0
    %498 = vmatprep.subr.mxu0 0.0
    %499 = vmatpush1.msra.mxu0 0.0
    %500 = vmatprep.subr.mxu0 0.0
    %501 = vmatpush1.msra.mxu0 0.0
    %502 = vmatprep.subr.mxu0 0.0
    %503 = vmatpush1.msra.mxu0 0.0
    %504 = vmatprep.subr.mxu0 0.0
    %505 = vmatpush1.msra.mxu0 0.0
    %506 = vmatprep.subr.mxu0 0.0
    %507 = vmatpush1.msra.mxu0 0.0
    %508 = vmatprep.subr.mxu0 0.0
    %509 = vmatpush1.msra.mxu0 0.0
    %510 = vmatprep.subr.mxu0 0.0
    %511 = vmatpush1.msra.mxu0 0.0
    %512 = vmatprep.subr.mxu0 0.0
    %513 = vmatpush1.msra.mxu0 0.0
    %514 = vmatprep.subr.mxu0 0.0
    %515 = vmatpush1.msra.mxu0 0.0
    %516 = vmatprep.subr.mxu0 0.0
    %517 = vmatpush1.msra.mxu0 0.0
    %518 = vmatprep.subr.mxu0 0.0
    %519 = vmatpush1.msra.mxu0 0.0
    %520 = vmatprep.subr.mxu0 0.0
    %521 = vmatpush1.msra.mxu0 0.0
    %522 = vmatprep.subr.mxu0 0.0
    %523 = vmatpush1.msra.mxu0 0.0
    %524 = vmatprep.subr.mxu0 0.0
    %525 = vmatpush1.msra.mxu0 0.0
    %526 = vmatprep.subr.mxu0 0.0
    %527 = vmatpush1.msra.mxu0 0.0
    %528 = vmatprep.subr.mxu0 0.0
    %529 = vmatpush1.msra.mxu0 0.0
    %530 = vmatprep.subr.mxu0 0.0
    %531 = vmatpush1.msra.mxu0 0.0
    %532 = vmatprep.mubr.f32.mxu0 0.0
    %533 = vmatmul.mubr.f32.gmra.mrb[0].mxu0 %v466
    %v534 = vpop.f32.mrb[0].mxu0
    %v535 = vadd.f32 0.0, %v534
    %v536 = vpop.f32.mrb[0].mxu0
    %537 = vdwg.mxu0
    %538 = vrot.lane.b32.xlu0 %v284, 96
    %v539 = vpop.permute.xlu0 %538
    %v542 = vsel %vm287, %v461, 0
    %544 = vmatprep.subr.mxu0 0.0
    %545 = vmatpush1.msra.mxu0 %v539
    %546 = vmatprep.subr.mxu0 0.0
    %547 = vmatpush1.msra.mxu0 0.0
    %548 = vmatprep.subr.mxu0 0.0
    %549 = vmatpush1.msra.mxu0 0.0
    %550 = vmatprep.subr.mxu0 0.0
    %551 = vmatpush1.msra.mxu0 0.0
    %552 = vmatprep.subr.mxu0 0.0
    %553 = vmatpush1.msra.mxu0 0.0
    %554 = vmatprep.subr.mxu0 0.0
    %555 = vmatpush1.msra.mxu0 0.0
    %556 = vmatprep.subr.mxu0 0.0
    %557 = vmatpush1.msra.mxu0 0.0
    %558 = vmatprep.subr.mxu0 0.0
    %559 = vmatpush1.msra.mxu0 0.0
    %560 = vmatprep.subr.mxu0 0.0
    %561 = vmatpush1.msra.mxu0 0.0
    %562 = vmatprep.subr.mxu0 0.0
    %563 = vmatpush1.msra.mxu0 0.0
    %564 = vmatprep.subr.mxu0 0.0
    %565 = vmatpush1.msra.mxu0 0.0
    %566 = vmatprep.subr.mxu0 0.0
    %567 = vmatpush1.msra.mxu0 0.0
    %568 = vmatprep.subr.mxu0 0.0
    %569 = vmatpush1.msra.mxu0 0.0
    %570 = vmatprep.subr.mxu0 0.0
    %571 = vmatpush1.msra.mxu0 0.0
    %572 = vmatprep.subr.mxu0 0.0
    %573 = vmatpush1.msra.mxu0 0.0
    %574 = vmatprep.subr.mxu0 0.0
    %575 = vmatpush1.msra.mxu0 0.0
    %576 = vmatprep.subr.mxu0 0.0
    %577 = vmatpush1.msra.mxu0 0.0
    %578 = vmatprep.subr.mxu0 0.0
    %579 = vmatpush1.msra.mxu0 0.0
    %580 = vmatprep.subr.mxu0 0.0
    %581 = vmatpush1.msra.mxu0 0.0
    %582 = vmatprep.subr.mxu0 0.0
    %583 = vmatpush1.msra.mxu0 0.0
    %584 = vmatprep.subr.mxu0 0.0
    %585 = vmatpush1.msra.mxu0 0.0
    %586 = vmatprep.subr.mxu0 0.0
    %587 = vmatpush1.msra.mxu0 0.0
    %588 = vmatprep.subr.mxu0 0.0
    %589 = vmatpush1.msra.mxu0 0.0
    %590 = vmatprep.subr.mxu0 0.0
    %591 = vmatpush1.msra.mxu0 0.0
    %592 = vmatprep.subr.mxu0 0.0
    %593 = vmatpush1.msra.mxu0 0.0
    %594 = vmatprep.subr.mxu0 0.0
    %595 = vmatpush1.msra.mxu0 0.0
    %596 = vmatprep.subr.mxu0 0.0
    %597 = vmatpush1.msra.mxu0 0.0
    %598 = vmatprep.subr.mxu0 0.0
    %599 = vmatpush1.msra.mxu0 0.0
    %600 = vmatprep.subr.mxu0 0.0
    %601 = vmatpush1.msra.mxu0 0.0
    %602 = vmatprep.subr.mxu0 0.0
    %603 = vmatpush1.msra.mxu0 0.0
    %604 = vmatprep.subr.mxu0 0.0
    %605 = vmatpush1.msra.mxu0 0.0
    %606 = vmatprep.subr.mxu0 0.0
    %607 = vmatpush1.msra.mxu0 0.0
    %608 = vmatprep.mubr.f32.mxu0 0.0
    %609 = vmatmul.mubr.f32.gmra.mrb[0].mxu0 %v542
    %v610 = vpop.f32.mrb[0].mxu0
    %v611 = vadd.f32 0.0, %v610
    %v612 = vpop.f32.mrb[0].mxu0
    %613 = vdwg.mxu0
    %614 = vrot.lane.b32.xlu0 %v187, 120
    %v615 = vpop.permute.xlu0 %614
    %616 = vrot.lane.b32.xlu0 %v279, 120
    %v617 = vpop.permute.xlu0 %616
    %v618 = vsel %vm287, %v615, 0
    %v620 = vsel %vm287, %v617, 0
    %622 = vmatprep.subr.mxu0 0.0
    %623 = vmatpush1.xpose.msra.mxu0 %v620
    %624 = vmatprep.subr.mxu0 0.0
    %625 = vmatpush1.xpose.msra.mxu0 0.0
    %626 = vmatprep.subr.mxu0 0.0
    %627 = vmatpush1.xpose.msra.mxu0 0.0
    %628 = vmatprep.subr.mxu0 0.0
    %629 = vmatpush1.xpose.msra.mxu0 0.0
    %630 = vmatprep.subr.mxu0 0.0
    %631 = vmatpush1.xpose.msra.mxu0 0.0
    %632 = vmatprep.subr.mxu0 0.0
    %633 = vmatpush1.xpose.msra.mxu0 0.0
    %634 = vmatprep.subr.mxu0 0.0
    %635 = vmatpush1.xpose.msra.mxu0 0.0
    %636 = vmatprep.subr.mxu0 0.0
    %637 = vmatpush1.xpose.msra.mxu0 0.0
    %638 = vmatprep.subr.mxu0 0.0
    %639 = vmatpush1.xpose.msra.mxu0 0.0
    %640 = vmatprep.subr.mxu0 0.0
    %641 = vmatpush1.xpose.msra.mxu0 0.0
    %642 = vmatprep.subr.mxu0 0.0
    %643 = vmatpush1.xpose.msra.mxu0 0.0
    %644 = vmatprep.subr.mxu0 0.0
    %645 = vmatpush1.xpose.msra.mxu0 0.0
    %646 = vmatprep.subr.mxu0 0.0
    %647 = vmatpush1.xpose.msra.mxu0 0.0
    %648 = vmatprep.subr.mxu0 0.0
    %649 = vmatpush1.xpose.msra.mxu0 0.0
    %650 = vmatprep.subr.mxu0 0.0
    %651 = vmatpush1.xpose.msra.mxu0 0.0
    %652 = vmatprep.subr.mxu0 0.0
    %653 = vmatpush1.xpose.msra.mxu0 0.0
    %654 = vmatprep.subr.mxu0 0.0
    %655 = vmatpush1.xpose.msra.mxu0 0.0
    %656 = vmatprep.subr.mxu0 0.0
    %657 = vmatpush1.xpose.msra.mxu0 0.0
    %658 = vmatprep.subr.mxu0 0.0
    %659 = vmatpush1.xpose.msra.mxu0 0.0
    %660 = vmatprep.subr.mxu0 0.0
    %661 = vmatpush1.xpose.msra.mxu0 0.0
    %662 = vmatprep.subr.mxu0 0.0
    %663 = vmatpush1.xpose.msra.mxu0 0.0
    %664 = vmatprep.subr.mxu0 0.0
    %665 = vmatpush1.xpose.msra.mxu0 0.0
    %666 = vmatprep.subr.mxu0 0.0
    %667 = vmatpush1.xpose.msra.mxu0 0.0
    %668 = vmatprep.subr.mxu0 0.0
    %669 = vmatpush1.xpose.msra.mxu0 0.0
    %670 = vmatprep.subr.mxu0 0.0
    %671 = vmatpush1.xpose.msra.mxu0 0.0
    %672 = vmatprep.subr.mxu0 0.0
    %673 = vmatpush1.xpose.msra.mxu0 0.0
    %674 = vmatprep.subr.mxu0 0.0
    %675 = vmatpush1.xpose.msra.mxu0 0.0
    %676 = vmatprep.subr.mxu0 0.0
    %677 = vmatpush1.xpose.msra.mxu0 0.0
    %678 = vmatprep.subr.mxu0 0.0
    %679 = vmatpush1.xpose.msra.mxu0 0.0
    %680 = vmatprep.subr.mxu0 0.0
    %681 = vmatpush1.xpose.msra.mxu0 0.0
    %682 = vmatprep.subr.mxu0 0.0
    %683 = vmatpush1.xpose.msra.mxu0 0.0
    %684 = vmatprep.subr.mxu0 0.0
    %685 = vmatpush1.xpose.msra.mxu0 0.0
    %686 = vmatprep.mubr.f32.mxu0 0.0
    %687 = vmatmul.mubr.f32.gmra.mrb[0].mxu0 %v618
    %v688 = vpop.f32.mrb[0].mxu0
    %v689 = vadd.f32 0.0, %v688
    %v690 = vpop.f32.mrb[0].mxu0
    %691 = vdwg.mxu0
    %692 = vrot.lane.b32.xlu0 %v192, 120
    %v693 = vpop.permute.xlu0 %692
    %694 = vrot.lane.b32.xlu0 %v284, 120
    %v695 = vpop.permute.xlu0 %694
    %v696 = vsel %vm287, %v693, 0
    %v698 = vsel %vm287, %v695, 0
    %700 = vmatprep.subr.mxu0 0.0
    %701 = vmatpush1.xpose.msra.mxu0 %v698
    %702 = vmatprep.subr.mxu0 0.0
    %703 = vmatpush1.xpose.msra.mxu0 0.0
    %704 = vmatprep.subr.mxu0 0.0
    %705 = vmatpush1.xpose.msra.mxu0 0.0
    %706 = vmatprep.subr.mxu0 0.0
    %707 = vmatpush1.xpose.msra.mxu0 0.0
    %708 = vmatprep.subr.mxu0 0.0
    %709 = vmatpush1.xpose.msra.mxu0 0.0
    %710 = vmatprep.subr.mxu0 0.0
    %711 = vmatpush1.xpose.msra.mxu0 0.0
    %712 = vmatprep.subr.mxu0 0.0
    %713 = vmatpush1.xpose.msra.mxu0 0.0
    %714 = vmatprep.subr.mxu0 0.0
    %715 = vmatpush1.xpose.msra.mxu0 0.0
    %716 = vmatprep.subr.mxu0 0.0
    %717 = vmatpush1.xpose.msra.mxu0 0.0
    %718 = vmatprep.subr.mxu0 0.0
    %719 = vmatpush1.xpose.msra.mxu0 0.0
    %720 = vmatprep.subr.mxu0 0.0
    %721 = vmatpush1.xpose.msra.mxu0 0.0
    %722 = vmatprep.subr.mxu0 0.0
    %723 = vmatpush1.xpose.msra.mxu0 0.0
    %724 = vmatprep.subr.mxu0 0.0
    %725 = vmatpush1.xpose.msra.mxu0 0.0
    %726 = vmatprep.subr.mxu0 0.0
    %727 = vmatpush1.xpose.msra.mxu0 0.0
    %728 = vmatprep.subr.mxu0 0.0
    %729 = vmatpush1.xpose.msra.mxu0 0.0
    %730 = vmatprep.subr.mxu0 0.0
    %731 = vmatpush1.xpose.msra.mxu0 0.0
    %732 = vmatprep.subr.mxu0 0.0
    %733 = vmatpush1.xpose.msra.mxu0 0.0
    %734 = vmatprep.subr.mxu0 0.0
    %735 = vmatpush1.xpose.msra.mxu0 0.0
    %736 = vmatprep.subr.mxu0 0.0
    %737 = vmatpush1.xpose.msra.mxu0 0.0
    %738 = vmatprep.subr.mxu0 0.0
    %739 = vmatpush1.xpose.msra.mxu0 0.0
    %740 = vmatprep.subr.mxu0 0.0
    %741 = vmatpush1.xpose.msra.mxu0 0.0
    %742 = vmatprep.subr.mxu0 0.0
    %743 = vmatpush1.xpose.msra.mxu0 0.0
    %744 = vmatprep.subr.mxu0 0.0
    %745 = vmatpush1.xpose.msra.mxu0 0.0
    %746 = vmatprep.subr.mxu0 0.0
    %747 = vmatpush1.xpose.msra.mxu0 0.0
    %748 = vmatprep.subr.mxu0 0.0
    %749 = vmatpush1.xpose.msra.mxu0 0.0
    %750 = vmatprep.subr.mxu0 0.0
    %751 = vmatpush1.xpose.msra.mxu0 0.0
    %752 = vmatprep.subr.mxu0 0.0
    %753 = vmatpush1.xpose.msra.mxu0 0.0
    %754 = vmatprep.subr.mxu0 0.0
    %755 = vmatpush1.xpose.msra.mxu0 0.0
    %756 = vmatprep.subr.mxu0 0.0
    %757 = vmatpush1.xpose.msra.mxu0 0.0
    %758 = vmatprep.subr.mxu0 0.0
    %759 = vmatpush1.xpose.msra.mxu0 0.0
    %760 = vmatprep.subr.mxu0 0.0
    %761 = vmatpush1.xpose.msra.mxu0 0.0
    %762 = vmatprep.subr.mxu0 0.0
    %763 = vmatpush1.xpose.msra.mxu0 0.0
    %764 = vmatprep.mubr.f32.mxu0 0.0
    %765 = vmatmul.mubr.f32.gmra.mrb[0].mxu0 %v696
    %v766 = vpop.f32.mrb[0].mxu0
    %v767 = vadd.f32 0.0, %v766
    %v768 = vpop.f32.mrb[0].mxu0
    %769 = vdwg.mxu0
    %v770 = vsel %vm287, %v689, -inf
    %771 = vmax.xlane.f32.xlu0 %v770
    %v772 = vpop.xlane.xlu0 %771
    %v773 = vsel %vm287, %v767, -inf
    %774 = vmax.xlane.f32.xlu0 %v773
    %v775 = vpop.xlane.xlu0 %774
    %v776 = vsub.f32 %v689, %v772
    %v777 = vsub.f32 %v767, %v775
    %v778 = vmul.f32 %v776, 1.442695
    %v779 = vpow.pop %v778
    %v780 = vmul.f32 %v777, 1.442695
    %v781 = vpow.pop %v780
    %v782 = vsel %vm287, %v779, 0.0
    %783 = vadd.xlane.f32.xlu0 %v782
    %v784 = vpop.xlane.xlu0 %783
    %v785 = vsel %vm287, %v781, 0.0
    %786 = vadd.xlane.f32.xlu0 %v785
    %v787 = vpop.xlane.xlu0 %786
    %v788 = vrcp.pop %v784
    %v789 = vrcp.pop %v787
    %v790 = vmul.f32 %v779, %v788
    %v791 = vmul.f32 %v781, %v789
    %792 = vrot.lane.b32.xlu0 %v279, 88
    %v793 = vpop.permute.xlu0 %792
    %v796 = vsel %vm287, %v790, 0
    %798 = vmatprep.subr.mxu0 0.0
    %799 = vmatpush1.msra.mxu0 %v793
    %800 = vmatprep.subr.mxu0 0.0
    %801 = vmatpush1.msra.mxu0 0.0
    %802 = vmatprep.subr.mxu0 0.0
    %803 = vmatpush1.msra.mxu0 0.0
    %804 = vmatprep.subr.mxu0 0.0
    %805 = vmatpush1.msra.mxu0 0.0
    %806 = vmatprep.subr.mxu0 0.0
    %807 = vmatpush1.msra.mxu0 0.0
    %808 = vmatprep.subr.mxu0 0.0
    %809 = vmatpush1.msra.mxu0 0.0
    %810 = vmatprep.subr.mxu0 0.0
    %811 = vmatpush1.msra.mxu0 0.0
    %812 = vmatprep.subr.mxu0 0.0
    %813 = vmatpush1.msra.mxu0 0.0
    %814 = vmatprep.subr.mxu0 0.0
    %815 = vmatpush1.msra.mxu0 0.0
    %816 = vmatprep.subr.mxu0 0.0
    %817 = vmatpush1.msra.mxu0 0.0
    %818 = vmatprep.subr.mxu0 0.0
    %819 = vmatpush1.msra.mxu0 0.0
    %820 = vmatprep.subr.mxu0 0.0
    %821 = vmatpush1.msra.mxu0 0.0
    %822 = vmatprep.subr.mxu0 0.0
    %823 = vmatpush1.msra.mxu0 0.0
    %824 = vmatprep.subr.mxu0 0.0
    %825 = vmatpush1.msra.mxu0 0.0
    %826 = vmatprep.subr.mxu0 0.0
    %827 = vmatpush1.msra.mxu0 0.0
    %828 = vmatprep.subr.mxu0 0.0
    %829 = vmatpush1.msra.mxu0 0.0
    %830 = vmatprep.subr.mxu0 0.0
    %831 = vmatpush1.msra.mxu0 0.0
    %832 = vmatprep.subr.mxu0 0.0
    %833 = vmatpush1.msra.mxu0 0.0
    %834 = vmatprep.subr.mxu0 0.0
    %835 = vmatpush1.msra.mxu0 0.0
    %836 = vmatprep.subr.mxu0 0.0
    %837 = vmatpush1.msra.mxu0 0.0
    %838 = vmatprep.subr.mxu0 0.0
    %839 = vmatpush1.msra.mxu0 0.0
    %840 = vmatprep.subr.mxu0 0.0
    %841 = vmatpush1.msra.mxu0 0.0
    %842 = vmatprep.subr.mxu0 0.0
    %843 = vmatpush1.msra.mxu0 0.0
    %844 = vmatprep.subr.mxu0 0.0
    %845 = vmatpush1.msra.mxu0 0.0
    %846 = vmatprep.subr.mxu0 0.0
    %847 = vmatpush1.msra.mxu0 0.0
    %848 = vmatprep.subr.mxu0 0.0
    %849 = vmatpush1.msra.mxu0 0.0
    %850 = vmatprep.subr.mxu0 0.0
    %851 = vmatpush1.msra.mxu0 0.0
    %852 = vmatprep.subr.mxu0 0.0
    %853 = vmatpush1.msra.mxu0 0.0
    %854 = vmatprep.subr.mxu0 0.0
    %855 = vmatpush1.msra.mxu0 0.0
    %856 = vmatprep.subr.mxu0 0.0
    %857 = vmatpush1.msra.mxu0 0.0
    %858 = vmatprep.subr.mxu0 0.0
    %859 = vmatpush1.msra.mxu0 0.0
    %860 = vmatprep.subr.mxu0 0.0
    %861 = vmatpush1.msra.mxu0 0.0
    %862 = vmatprep.mubr.f32.mxu0 0.0
    %863 = vmatmul.mubr.f32.gmra.mrb[0].mxu0 %v796
    %v864 = vpop.f32.mrb[0].mxu0
    %v865 = vadd.f32 0.0, %v864
    %v866 = vpop.f32.mrb[0].mxu0
    %867 = vdwg.mxu0
    %868 = vrot.lane.b32.xlu0 %v284, 88
    %v869 = vpop.permute.xlu0 %868
    %v872 = vsel %vm287, %v791, 0
    %874 = vmatprep.subr.mxu0 0.0
    %875 = vmatpush1.msra.mxu0 %v869
    %876 = vmatprep.subr.mxu0 0.0
    %877 = vmatpush1.msra.mxu0 0.0
    %878 = vmatprep.subr.mxu0 0.0
    %879 = vmatpush1.msra.mxu0 0.0
    %880 = vmatprep.subr.mxu0 0.0
    %881 = vmatpush1.msra.mxu0 0.0
    %882 = vmatprep.subr.mxu0 0.0
    %883 = vmatpush1.msra.mxu0 0.0
    %884 = vmatprep.subr.mxu0 0.0
    %885 = vmatpush1.msra.mxu0 0.0
    %886 = vmatprep.subr.mxu0 0.0
    %887 = vmatpush1.msra.mxu0 0.0
    %888 = vmatprep.subr.mxu0 0.0
    %889 = vmatpush1.msra.mxu0 0.0
    %890 = vmatprep.subr.mxu0 0.0
    %891 = vmatpush1.msra.mxu0 0.0
    %892 = vmatprep.subr.mxu0 0.0
    %893 = vmatpush1.msra.mxu0 0.0
    %894 = vmatprep.subr.mxu0 0.0
    %895 = vmatpush1.msra.mxu0 0.0
    %896 = vmatprep.subr.mxu0 0.0
    %897 = vmatpush1.msra.mxu0 0.0
    %898 = vmatprep.subr.mxu0 0.0
    %899 = vmatpush1.msra.mxu0 0.0
    %900 = vmatprep.subr.mxu0 0.0
    %901 = vmatpush1.msra.mxu0 0.0
    %902 = vmatprep.subr.mxu0 0.0
    %903 = vmatpush1.msra.mxu0 0.0
    %904 = vmatprep.subr.mxu0 0.0
    %905 = vmatpush1.msra.mxu0 0.0
    %906 = vmatprep.subr.mxu0 0.0
    %907 = vmatpush1.msra.mxu0 0.0
    %908 = vmatprep.subr.mxu0 0.0
    %909 = vmatpush1.msra.mxu0 0.0
    %910 = vmatprep.subr.mxu0 0.0
    %911 = vmatpush1.msra.mxu0 0.0
    %912 = vmatprep.subr.mxu0 0.0
    %913 = vmatpush1.msra.mxu0 0.0
    %914 = vmatprep.subr.mxu0 0.0
    %915 = vmatpush1.msra.mxu0 0.0
    %916 = vmatprep.subr.mxu0 0.0
    %917 = vmatpush1.msra.mxu0 0.0
    %918 = vmatprep.subr.mxu0 0.0
    %919 = vmatpush1.msra.mxu0 0.0
    %920 = vmatprep.subr.mxu0 0.0
    %921 = vmatpush1.msra.mxu0 0.0
    %922 = vmatprep.subr.mxu0 0.0
    %923 = vmatpush1.msra.mxu0 0.0
    %924 = vmatprep.subr.mxu0 0.0
    %925 = vmatpush1.msra.mxu0 0.0
    %926 = vmatprep.subr.mxu0 0.0
    %927 = vmatpush1.msra.mxu0 0.0
    %928 = vmatprep.subr.mxu0 0.0
    %929 = vmatpush1.msra.mxu0 0.0
    %930 = vmatprep.subr.mxu0 0.0
    %931 = vmatpush1.msra.mxu0 0.0
    %932 = vmatprep.subr.mxu0 0.0
    %933 = vmatpush1.msra.mxu0 0.0
    %934 = vmatprep.subr.mxu0 0.0
    %935 = vmatpush1.msra.mxu0 0.0
    %936 = vmatprep.subr.mxu0 0.0
    %937 = vmatpush1.msra.mxu0 0.0
    %938 = vmatprep.mubr.f32.mxu0 0.0
    %939 = vmatmul.mubr.f32.gmra.mrb[0].mxu0 %v872
    %v940 = vpop.f32.mrb[0].mxu0
    %v941 = vadd.f32 0.0, %v940
    %v942 = vpop.f32.mrb[0].mxu0
    %943 = vdwg.mxu0
    %944 = vrot.lane.b32.xlu0 %v187, 112
    %v945 = vpop.permute.xlu0 %944
    %946 = vrot.lane.b32.xlu0 %v279, 112
    %v947 = vpop.permute.xlu0 %946
    %v948 = vsel %vm287, %v945, 0
    %v950 = vsel %vm287, %v947, 0
    %952 = vmatprep.subr.mxu0 0.0
    %953 = vmatpush1.xpose.msra.mxu0 %v950
    %954 = vmatprep.subr.mxu0 0.0
    %955 = vmatpush1.xpose.msra.mxu0 0.0
    %956 = vmatprep.subr.mxu0 0.0
    %957 = vmatpush1.xpose.msra.mxu0 0.0
    %958 = vmatprep.subr.mxu0 0.0
    %959 = vmatpush1.xpose.msra.mxu0 0.0
    %960 = vmatprep.subr.mxu0 0.0
    %961 = vmatpush1.xpose.msra.mxu0 0.0
    %962 = vmatprep.subr.mxu0 0.0
    %963 = vmatpush1.xpose.msra.mxu0 0.0
    %964 = vmatprep.subr.mxu0 0.0
    %965 = vmatpush1.xpose.msra.mxu0 0.0
    %966 = vmatprep.subr.mxu0 0.0
    %967 = vmatpush1.xpose.msra.mxu0 0.0
    %968 = vmatprep.subr.mxu0 0.0
    %969 = vmatpush1.xpose.msra.mxu0 0.0
    %970 = vmatprep.subr.mxu0 0.0
    %971 = vmatpush1.xpose.msra.mxu0 0.0
    %972 = vmatprep.subr.mxu0 0.0
    %973 = vmatpush1.xpose.msra.mxu0 0.0
    %974 = vmatprep.subr.mxu0 0.0
    %975 = vmatpush1.xpose.msra.mxu0 0.0
    %976 = vmatprep.subr.mxu0 0.0
    %977 = vmatpush1.xpose.msra.mxu0 0.0
    %978 = vmatprep.subr.mxu0 0.0
    %979 = vmatpush1.xpose.msra.mxu0 0.0
    %980 = vmatprep.subr.mxu0 0.0
    %981 = vmatpush1.xpose.msra.mxu0 0.0
    %982 = vmatprep.subr.mxu0 0.0
    %983 = vmatpush1.xpose.msra.mxu0 0.0
    %984 = vmatprep.subr.mxu0 0.0
    %985 = vmatpush1.xpose.msra.mxu0 0.0
    %986 = vmatprep.subr.mxu0 0.0
    %987 = vmatpush1.xpose.msra.mxu0 0.0
    %988 = vmatprep.subr.mxu0 0.0
    %989 = vmatpush1.xpose.msra.mxu0 0.0
    %990 = vmatprep.subr.mxu0 0.0
    %991 = vmatpush1.xpose.msra.mxu0 0.0
    %992 = vmatprep.subr.mxu0 0.0
    %993 = vmatpush1.xpose.msra.mxu0 0.0
    %994 = vmatprep.subr.mxu0 0.0
    %995 = vmatpush1.xpose.msra.mxu0 0.0
    %996 = vmatprep.subr.mxu0 0.0
    %997 = vmatpush1.xpose.msra.mxu0 0.0
    %998 = vmatprep.subr.mxu0 0.0
    %999 = vmatpush1.xpose.msra.mxu0 0.0
    %1000 = vmatprep.subr.mxu0 0.0
    %1001 = vmatpush1.xpose.msra.mxu0 0.0
    %1002 = vmatprep.subr.mxu0 0.0
    %1003 = vmatpush1.xpose.msra.mxu0 0.0
    %1004 = vmatprep.subr.mxu0 0.0
    %1005 = vmatpush1.xpose.msra.mxu0 0.0
    %1006 = vmatprep.subr.mxu0 0.0
    %1007 = vmatpush1.xpose.msra.mxu0 0.0
    %1008 = vmatprep.subr.mxu0 0.0
    %1009 = vmatpush1.xpose.msra.mxu0 0.0
    %1010 = vmatprep.subr.mxu0 0.0
    %1011 = vmatpush1.xpose.msra.mxu0 0.0
    %1012 = vmatprep.subr.mxu0 0.0
    %1013 = vmatpush1.xpose.msra.mxu0 0.0
    %1014 = vmatprep.subr.mxu0 0.0
    %1015 = vmatpush1.xpose.msra.mxu0 0.0
    %1016 = vmatprep.mubr.f32.mxu0 0.0
    %1017 = vmatmul.mubr.f32.gmra.mrb[0].mxu0 %v948
    %v1018 = vpop.f32.mrb[0].mxu0
    %v1019 = vadd.f32 0.0, %v1018
    %v1020 = vpop.f32.mrb[0].mxu0
    %1021 = vdwg.mxu0
    %1022 = vrot.lane.b32.xlu0 %v192, 112
    %v1023 = vpop.permute.xlu0 %1022
    %1024 = vrot.lane.b32.xlu0 %v284, 112
    %v1025 = vpop.permute.xlu0 %1024
    %v1026 = vsel %vm287, %v1023, 0
    %v1028 = vsel %vm287, %v1025, 0
    %1030 = vmatprep.subr.mxu0 0.0
    %1031 = vmatpush1.xpose.msra.mxu0 %v1028
    %1032 = vmatprep.subr.mxu0 0.0
    %1033 = vmatpush1.xpose.msra.mxu0 0.0
    %1034 = vmatprep.subr.mxu0 0.0
    %1035 = vmatpush1.xpose.msra.mxu0 0.0
    %1036 = vmatprep.subr.mxu0 0.0
    %1037 = vmatpush1.xpose.msra.mxu0 0.0
    %1038 = vmatprep.subr.mxu0 0.0
    %1039 = vmatpush1.xpose.msra.mxu0 0.0
    %1040 = vmatprep.subr.mxu0 0.0
    %1041 = vmatpush1.xpose.msra.mxu0 0.0
    %1042 = vmatprep.subr.mxu0 0.0
    %1043 = vmatpush1.xpose.msra.mxu0 0.0
    %1044 = vmatprep.subr.mxu0 0.0
    %1045 = vmatpush1.xpose.msra.mxu0 0.0
    %1046 = vmatprep.subr.mxu0 0.0
    %1047 = vmatpush1.xpose.msra.mxu0 0.0
    %1048 = vmatprep.subr.mxu0 0.0
    %1049 = vmatpush1.xpose.msra.mxu0 0.0
    %1050 = vmatprep.subr.mxu0 0.0
    %1051 = vmatpush1.xpose.msra.mxu0 0.0
    %1052 = vmatprep.subr.mxu0 0.0
    %1053 = vmatpush1.xpose.msra.mxu0 0.0
    %1054 = vmatprep.subr.mxu0 0.0
    %1055 = vmatpush1.xpose.msra.mxu0 0.0
    %1056 = vmatprep.subr.mxu0 0.0
    %1057 = vmatpush1.xpose.msra.mxu0 0.0
    %1058 = vmatprep.subr.mxu0 0.0
    %1059 = vmatpush1.xpose.msra.mxu0 0.0
    %1060 = vmatprep.subr.mxu0 0.0
    %1061 = vmatpush1.xpose.msra.mxu0 0.0
    %1062 = vmatprep.subr.mxu0 0.0
    %1063 = vmatpush1.xpose.msra.mxu0 0.0
    %1064 = vmatprep.subr.mxu0 0.0
    %1065 = vmatpush1.xpose.msra.mxu0 0.0
    %1066 = vmatprep.subr.mxu0 0.0
    %1067 = vmatpush1.xpose.msra.mxu0 0.0
    %1068 = vmatprep.subr.mxu0 0.0
    %1069 = vmatpush1.xpose.msra.mxu0 0.0
    %1070 = vmatprep.subr.mxu0 0.0
    %1071 = vmatpush1.xpose.msra.mxu0 0.0
    %1072 = vmatprep.subr.mxu0 0.0
    %1073 = vmatpush1.xpose.msra.mxu0 0.0
    %1074 = vmatprep.subr.mxu0 0.0
    %1075 = vmatpush1.xpose.msra.mxu0 0.0
    %1076 = vmatprep.subr.mxu0 0.0
    %1077 = vmatpush1.xpose.msra.mxu0 0.0
    %1078 = vmatprep.subr.mxu0 0.0
    %1079 = vmatpush1.xpose.msra.mxu0 0.0
    %1080 = vmatprep.subr.mxu0 0.0
    %1081 = vmatpush1.xpose.msra.mxu0 0.0
    %1082 = vmatprep.subr.mxu0 0.0
    %1083 = vmatpush1.xpose.msra.mxu0 0.0
    %1084 = vmatprep.subr.mxu0 0.0
    %1085 = vmatpush1.xpose.msra.mxu0 0.0
    %1086 = vmatprep.subr.mxu0 0.0
    %1087 = vmatpush1.xpose.msra.mxu0 0.0
    %1088 = vmatprep.subr.mxu0 0.0
    %1089 = vmatpush1.xpose.msra.mxu0 0.0
    %1090 = vmatprep.subr.mxu0 0.0
    %1091 = vmatpush1.xpose.msra.mxu0 0.0
    %1092 = vmatprep.subr.mxu0 0.0
    %1093 = vmatpush1.xpose.msra.mxu0 0.0
    %1094 = vmatprep.mubr.f32.mxu0 0.0
    %1095 = vmatmul.mubr.f32.gmra.mrb[0].mxu0 %v1026
    %v1096 = vpop.f32.mrb[0].mxu0
    %v1097 = vadd.f32 0.0, %v1096
    %v1098 = vpop.f32.mrb[0].mxu0
    %1099 = vdwg.mxu0
    %v1100 = vsel %vm287, %v1019, -inf
    %1101 = vmax.xlane.f32.xlu0 %v1100
    %v1102 = vpop.xlane.xlu0 %1101
    %v1103 = vsel %vm287, %v1097, -inf
    %1104 = vmax.xlane.f32.xlu0 %v1103
    %v1105 = vpop.xlane.xlu0 %1104
    %v1106 = vsub.f32 %v1019, %v1102
    %v1107 = vsub.f32 %v1097, %v1105
    %v1108 = vmul.f32 %v1106, 1.442695
    %v1109 = vpow.pop %v1108
    %v1110 = vmul.f32 %v1107, 1.442695
    %v1111 = vpow.pop %v1110
    %v1112 = vsel %vm287, %v1109, 0.0
    %1113 = vadd.xlane.f32.xlu0 %v1112
    %v1114 = vpop.xlane.xlu0 %1113
    %v1115 = vsel %vm287, %v1111, 0.0
    %1116 = vadd.xlane.f32.xlu0 %v1115
    %v1117 = vpop.xlane.xlu0 %1116
    %v1118 = vrcp.pop %v1114
    %v1119 = vrcp.pop %v1117
    %v1120 = vmul.f32 %v1109, %v1118
    %v1121 = vmul.f32 %v1111, %v1119
    %1122 = vrot.lane.b32.xlu0 %v279, 80
    %v1123 = vpop.permute.xlu0 %1122
    %v1126 = vsel %vm287, %v1120, 0
    %1128 = vmatprep.subr.mxu0 0.0
    %1129 = vmatpush1.msra.mxu0 %v1123
    %1130 = vmatprep.subr.mxu0 0.0
    %1131 = vmatpush1.msra.mxu0 0.0
    %1132 = vmatprep.subr.mxu0 0.0
    %1133 = vmatpush1.msra.mxu0 0.0
    %1134 = vmatprep.subr.mxu0 0.0
    %1135 = vmatpush1.msra.mxu0 0.0
    %1136 = vmatprep.subr.mxu0 0.0
    %1137 = vmatpush1.msra.mxu0 0.0
    %1138 = vmatprep.subr.mxu0 0.0
    %1139 = vmatpush1.msra.mxu0 0.0
    %1140 = vmatprep.subr.mxu0 0.0
    %1141 = vmatpush1.msra.mxu0 0.0
    %1142 = vmatprep.subr.mxu0 0.0
    %1143 = vmatpush1.msra.mxu0 0.0
    %1144 = vmatprep.subr.mxu0 0.0
    %1145 = vmatpush1.msra.mxu0 0.0
    %1146 = vmatprep.subr.mxu0 0.0
    %1147 = vmatpush1.msra.mxu0 0.0
    %1148 = vmatprep.subr.mxu0 0.0
    %1149 = vmatpush1.msra.mxu0 0.0
    %1150 = vmatprep.subr.mxu0 0.0
    %1151 = vmatpush1.msra.mxu0 0.0
    %1152 = vmatprep.subr.mxu0 0.0
    %1153 = vmatpush1.msra.mxu0 0.0
    %1154 = vmatprep.subr.mxu0 0.0
    %1155 = vmatpush1.msra.mxu0 0.0
    %1156 = vmatprep.subr.mxu0 0.0
    %1157 = vmatpush1.msra.mxu0 0.0
    %1158 = vmatprep.subr.mxu0 0.0
    %1159 = vmatpush1.msra.mxu0 0.0
    %1160 = vmatprep.subr.mxu0 0.0
    %1161 = vmatpush1.msra.mxu0 0.0
    %1162 = vmatprep.subr.mxu0 0.0
    %1163 = vmatpush1.msra.mxu0 0.0
    %1164 = vmatprep.subr.mxu0 0.0
    %1165 = vmatpush1.msra.mxu0 0.0
    %1166 = vmatprep.subr.mxu0 0.0
    %1167 = vmatpush1.msra.mxu0 0.0
    %1168 = vmatprep.subr.mxu0 0.0
    %1169 = vmatpush1.msra.mxu0 0.0
    %1170 = vmatprep.subr.mxu0 0.0
    %1171 = vmatpush1.msra.mxu0 0.0
    %1172 = vmatprep.subr.mxu0 0.0
    %1173 = vmatpush1.msra.mxu0 0.0
    %1174 = vmatprep.subr.mxu0 0.0
    %1175 = vmatpush1.msra.mxu0 0.0
    %1176 = vmatprep.subr.mxu0 0.0
    %1177 = vmatpush1.msra.mxu0 0.0
    %1178 = vmatprep.subr.mxu0 0.0
    %1179 = vmatpush1.msra.mxu0 0.0
    %1180 = vmatprep.subr.mxu0 0.0
    %1181 = vmatpush1.msra.mxu0 0.0
    %1182 = vmatprep.subr.mxu0 0.0
    %1183 = vmatpush1.msra.mxu0 0.0
    %1184 = vmatprep.subr.mxu0 0.0
    %1185 = vmatpush1.msra.mxu0 0.0
    %1186 = vmatprep.subr.mxu0 0.0
    %1187 = vmatpush1.msra.mxu0 0.0
    %1188 = vmatprep.subr.mxu0 0.0
    %1189 = vmatpush1.msra.mxu0 0.0
    %1190 = vmatprep.subr.mxu0 0.0
    %1191 = vmatpush1.msra.mxu0 0.0
    %1192 = vmatprep.mubr.f32.mxu0 0.0
    %1193 = vmatmul.mubr.f32.gmra.mrb[0].mxu0 %v1126
    %v1194 = vpop.f32.mrb[0].mxu0
    %v1195 = vadd.f32 0.0, %v1194
    %v1196 = vpop.f32.mrb[0].mxu0
    %1197 = vdwg.mxu0
    %1198 = vrot.lane.b32.xlu0 %v284, 80
    %v1199 = vpop.permute.xlu0 %1198
    %v1202 = vsel %vm287, %v1121, 0
    %1204 = vmatprep.subr.mxu0 0.0
    %1205 = vmatpush1.msra.mxu0 %v1199
    %1206 = vmatprep.subr.mxu0 0.0
    %1207 = vmatpush1.msra.mxu0 0.0
    %1208 = vmatprep.subr.mxu0 0.0
    %1209 = vmatpush1.msra.mxu0 0.0
    %1210 = vmatprep.subr.mxu0 0.0
    %1211 = vmatpush1.msra.mxu0 0.0
    %1212 = vmatprep.subr.mxu0 0.0
    %1213 = vmatpush1.msra.mxu0 0.0
    %1214 = vmatprep.subr.mxu0 0.0
    %1215 = vmatpush1.msra.mxu0 0.0
    %1216 = vmatprep.subr.mxu0 0.0
    %1217 = vmatpush1.msra.mxu0 0.0
    %1218 = vmatprep.subr.mxu0 0.0
    %1219 = vmatpush1.msra.mxu0 0.0
    %1220 = vmatprep.subr.mxu0 0.0
    %1221 = vmatpush1.msra.mxu0 0.0
    %1222 = vmatprep.subr.mxu0 0.0
    %1223 = vmatpush1.msra.mxu0 0.0
    %1224 = vmatprep.subr.mxu0 0.0
    %1225 = vmatpush1.msra.mxu0 0.0
    %1226 = vmatprep.subr.mxu0 0.0
    %1227 = vmatpush1.msra.mxu0 0.0
    %1228 = vmatprep.subr.mxu0 0.0
    %1229 = vmatpush1.msra.mxu0 0.0
    %1230 = vmatprep.subr.mxu0 0.0
    %1231 = vmatpush1.msra.mxu0 0.0
    %1232 = vmatprep.subr.mxu0 0.0
    %1233 = vmatpush1.msra.mxu0 0.0
    %1234 = vmatprep.subr.mxu0 0.0
    %1235 = vmatpush1.msra.mxu0 0.0
    %1236 = vmatprep.subr.mxu0 0.0
    %1237 = vmatpush1.msra.mxu0 0.0
    %1238 = vmatprep.subr.mxu0 0.0
    %1239 = vmatpush1.msra.mxu0 0.0
    %1240 = vmatprep.subr.mxu0 0.0
    %1241 = vmatpush1.msra.mxu0 0.0
    %1242 = vmatprep.subr.mxu0 0.0
    %1243 = vmatpush1.msra.mxu0 0.0
    %1244 = vmatprep.subr.mxu0 0.0
    %1245 = vmatpush1.msra.mxu0 0.0
    %1246 = vmatprep.subr.mxu0 0.0
    %1247 = vmatpush1.msra.mxu0 0.0
    %1248 = vmatprep.subr.mxu0 0.0
    %1249 = vmatpush1.msra.mxu0 0.0
    %1250 = vmatprep.subr.mxu0 0.0
    %1251 = vmatpush1.msra.mxu0 0.0
    %1252 = vmatprep.subr.mxu0 0.0
    %1253 = vmatpush1.msra.mxu0 0.0
    %1254 = vmatprep.subr.mxu0 0.0
    %1255 = vmatpush1.msra.mxu0 0.0
    %1256 = vmatprep.subr.mxu0 0.0
    %1257 = vmatpush1.msra.mxu0 0.0
    %1258 = vmatprep.subr.mxu0 0.0
    %1259 = vmatpush1.msra.mxu0 0.0
    %1260 = vmatprep.subr.mxu0 0.0
    %1261 = vmatpush1.msra.mxu0 0.0
    %1262 = vmatprep.subr.mxu0 0.0
    %1263 = vmatpush1.msra.mxu0 0.0
    %1264 = vmatprep.subr.mxu0 0.0
    %1265 = vmatpush1.msra.mxu0 0.0
    %1266 = vmatprep.subr.mxu0 0.0
    %1267 = vmatpush1.msra.mxu0 0.0
    %1268 = vmatprep.mubr.f32.mxu0 0.0
    %1269 = vmatmul.mubr.f32.gmra.mrb[0].mxu0 %v1202
    %v1270 = vpop.f32.mrb[0].mxu0
    %v1271 = vadd.f32 0.0, %v1270
    %v1272 = vpop.f32.mrb[0].mxu0
    %1273 = vdwg.mxu0
    %1274 = vrot.lane.b32.xlu0 %v187, 104
    %v1275 = vpop.permute.xlu0 %1274
    %1276 = vrot.lane.b32.xlu0 %v279, 104
    %v1277 = vpop.permute.xlu0 %1276
    %v1278 = vsel %vm287, %v1275, 0
    %v1280 = vsel %vm287, %v1277, 0
    %1282 = vmatprep.subr.mxu0 0.0
    %1283 = vmatpush1.xpose.msra.mxu0 %v1280
    %1284 = vmatprep.subr.mxu0 0.0
    %1285 = vmatpush1.xpose.msra.mxu0 0.0
    %1286 = vmatprep.subr.mxu0 0.0
    %1287 = vmatpush1.xpose.msra.mxu0 0.0
    %1288 = vmatprep.subr.mxu0 0.0
    %1289 = vmatpush1.xpose.msra.mxu0 0.0
    %1290 = vmatprep.subr.mxu0 0.0
    %1291 = vmatpush1.xpose.msra.mxu0 0.0
    %1292 = vmatprep.subr.mxu0 0.0
    %1293 = vmatpush1.xpose.msra.mxu0 0.0
    %1294 = vmatprep.subr.mxu0 0.0
    %1295 = vmatpush1.xpose.msra.mxu0 0.0
    %1296 = vmatprep.subr.mxu0 0.0
    %1297 = vmatpush1.xpose.msra.mxu0 0.0
    %1298 = vmatprep.subr.mxu0 0.0
    %1299 = vmatpush1.xpose.msra.mxu0 0.0
    %1300 = vmatprep.subr.mxu0 0.0
    %1301 = vmatpush1.xpose.msra.mxu0 0.0
    %1302 = vmatprep.subr.mxu0 0.0
    %1303 = vmatpush1.xpose.msra.mxu0 0.0
    %1304 = vmatprep.subr.mxu0 0.0
    %1305 = vmatpush1.xpose.msra.mxu0 0.0
    %1306 = vmatprep.subr.mxu0 0.0
    %1307 = vmatpush1.xpose.msra.mxu0 0.0
    %1308 = vmatprep.subr.mxu0 0.0
    %1309 = vmatpush1.xpose.msra.mxu0 0.0
    %1310 = vmatprep.subr.mxu0 0.0
    %1311 = vmatpush1.xpose.msra.mxu0 0.0
    %1312 = vmatprep.subr.mxu0 0.0
    %1313 = vmatpush1.xpose.msra.mxu0 0.0
    %1314 = vmatprep.subr.mxu0 0.0
    %1315 = vmatpush1.xpose.msra.mxu0 0.0
    %1316 = vmatprep.subr.mxu0 0.0
    %1317 = vmatpush1.xpose.msra.mxu0 0.0
    %1318 = vmatprep.subr.mxu0 0.0
    %1319 = vmatpush1.xpose.msra.mxu0 0.0
    %1320 = vmatprep.subr.mxu0 0.0
    %1321 = vmatpush1.xpose.msra.mxu0 0.0
    %1322 = vmatprep.subr.mxu0 0.0
    %1323 = vmatpush1.xpose.msra.mxu0 0.0
    %1324 = vmatprep.subr.mxu0 0.0
    %1325 = vmatpush1.xpose.msra.mxu0 0.0
    %1326 = vmatprep.subr.mxu0 0.0
    %1327 = vmatpush1.xpose.msra.mxu0 0.0
    %1328 = vmatprep.subr.mxu0 0.0
    %1329 = vmatpush1.xpose.msra.mxu0 0.0
    %1330 = vmatprep.subr.mxu0 0.0
    %1331 = vmatpush1.xpose.msra.mxu0 0.0
    %1332 = vmatprep.subr.mxu0 0.0
    %1333 = vmatpush1.xpose.msra.mxu0 0.0
    %1334 = vmatprep.subr.mxu0 0.0
    %1335 = vmatpush1.xpose.msra.mxu0 0.0
    %1336 = vmatprep.subr.mxu0 0.0
    %1337 = vmatpush1.xpose.msra.mxu0 0.0
    %1338 = vmatprep.subr.mxu0 0.0
    %1339 = vmatpush1.xpose.msra.mxu0 0.0
    %1340 = vmatprep.subr.mxu0 0.0
    %1341 = vmatpush1.xpose.msra.mxu0 0.0
    %1342 = vmatprep.subr.mxu0 0.0
    %1343 = vmatpush1.xpose.msra.mxu0 0.0
    %1344 = vmatprep.subr.mxu0 0.0
    %1345 = vmatpush1.xpose.msra.mxu0 0.0
    %1346 = vmatprep.mubr.f32.mxu0 0.0
    %1347 = vmatmul.mubr.f32.gmra.mrb[0].mxu0 %v1278
    %v1348 = vpop.f32.mrb[0].mxu0
    %v1349 = vadd.f32 0.0, %v1348
    %v1350 = vpop.f32.mrb[0].mxu0
    %1351 = vdwg.mxu0
    %1352 = vrot.lane.b32.xlu0 %v192, 104
    %v1353 = vpop.permute.xlu0 %1352
    %1354 = vrot.lane.b32.xlu0 %v284, 104
    %v1355 = vpop.permute.xlu0 %1354
    %v1356 = vsel %vm287, %v1353, 0
    %v1358 = vsel %vm287, %v1355, 0
    %1360 = vmatprep.subr.mxu0 0.0
    %1361 = vmatpush1.xpose.msra.mxu0 %v1358
    %1362 = vmatprep.subr.mxu0 0.0
    %1363 = vmatpush1.xpose.msra.mxu0 0.0
    %1364 = vmatprep.subr.mxu0 0.0
    %1365 = vmatpush1.xpose.msra.mxu0 0.0
    %1366 = vmatprep.subr.mxu0 0.0
    %1367 = vmatpush1.xpose.msra.mxu0 0.0
    %1368 = vmatprep.subr.mxu0 0.0
    %1369 = vmatpush1.xpose.msra.mxu0 0.0
    %1370 = vmatprep.subr.mxu0 0.0
    %1371 = vmatpush1.xpose.msra.mxu0 0.0
    %1372 = vmatprep.subr.mxu0 0.0
    %1373 = vmatpush1.xpose.msra.mxu0 0.0
    %1374 = vmatprep.subr.mxu0 0.0
    %1375 = vmatpush1.xpose.msra.mxu0 0.0
    %1376 = vmatprep.subr.mxu0 0.0
    %1377 = vmatpush1.xpose.msra.mxu0 0.0
    %1378 = vmatprep.subr.mxu0 0.0
    %1379 = vmatpush1.xpose.msra.mxu0 0.0
    %1380 = vmatprep.subr.mxu0 0.0
    %1381 = vmatpush1.xpose.msra.mxu0 0.0
    %1382 = vmatprep.subr.mxu0 0.0
    %1383 = vmatpush1.xpose.msra.mxu0 0.0
    %1384 = vmatprep.subr.mxu0 0.0
    %1385 = vmatpush1.xpose.msra.mxu0 0.0
    %1386 = vmatprep.subr.mxu0 0.0
    %1387 = vmatpush1.xpose.msra.mxu0 0.0
    %1388 = vmatprep.subr.mxu0 0.0
    %1389 = vmatpush1.xpose.msra.mxu0 0.0
    %1390 = vmatprep.subr.mxu0 0.0
    %1391 = vmatpush1.xpose.msra.mxu0 0.0
    %1392 = vmatprep.subr.mxu0 0.0
    %1393 = vmatpush1.xpose.msra.mxu0 0.0
    %1394 = vmatprep.subr.mxu0 0.0
    %1395 = vmatpush1.xpose.msra.mxu0 0.0
    %1396 = vmatprep.subr.mxu0 0.0
    %1397 = vmatpush1.xpose.msra.mxu0 0.0
    %1398 = vmatprep.subr.mxu0 0.0
    %1399 = vmatpush1.xpose.msra.mxu0 0.0
    %1400 = vmatprep.subr.mxu0 0.0
    %1401 = vmatpush1.xpose.msra.mxu0 0.0
    %1402 = vmatprep.subr.mxu0 0.0
    %1403 = vmatpush1.xpose.msra.mxu0 0.0
    %1404 = vmatprep.subr.mxu0 0.0
    %1405 = vmatpush1.xpose.msra.mxu0 0.0
    %1406 = vmatprep.subr.mxu0 0.0
    %1407 = vmatpush1.xpose.msra.mxu0 0.0
    %1408 = vmatprep.subr.mxu0 0.0
    %1409 = vmatpush1.xpose.msra.mxu0 0.0
    %1410 = vmatprep.subr.mxu0 0.0
    %1411 = vmatpush1.xpose.msra.mxu0 0.0
    %1412 = vmatprep.subr.mxu0 0.0
    %1413 = vmatpush1.xpose.msra.mxu0 0.0
    %1414 = vmatprep.subr.mxu0 0.0
    %1415 = vmatpush1.xpose.msra.mxu0 0.0
    %1416 = vmatprep.subr.mxu0 0.0
    %1417 = vmatpush1.xpose.msra.mxu0 0.0
    %1418 = vmatprep.subr.mxu0 0.0
    %1419 = vmatpush1.xpose.msra.mxu0 0.0
    %1420 = vmatprep.subr.mxu0 0.0
    %1421 = vmatpush1.xpose.msra.mxu0 0.0
    %1422 = vmatprep.subr.mxu0 0.0
    %1423 = vmatpush1.xpose.msra.mxu0 0.0
    %1424 = vmatprep.mubr.f32.mxu0 0.0
    %1425 = vmatmul.mubr.f32.gmra.mrb[0].mxu0 %v1356
    %v1426 = vpop.f32.mrb[0].mxu0
    %v1427 = vadd.f32 0.0, %v1426
    %v1428 = vpop.f32.mrb[0].mxu0
    %1429 = vdwg.mxu0
    %v1430 = vsel %vm287, %v1349, -inf
    %1431 = vmax.xlane.f32.xlu0 %v1430
    %v1432 = vpop.xlane.xlu0 %1431
    %v1433 = vsel %vm287, %v1427, -inf
    %1434 = vmax.xlane.f32.xlu0 %v1433
    %v1435 = vpop.xlane.xlu0 %1434
    %v1436 = vsub.f32 %v1349, %v1432
    %v1437 = vsub.f32 %v1427, %v1435
    %v1438 = vmul.f32 %v1436, 1.442695
    %v1439 = vpow.pop %v1438
    %v1440 = vmul.f32 %v1437, 1.442695
    %v1441 = vpow.pop %v1440
    %v1442 = vsel %vm287, %v1439, 0.0
    %1443 = vadd.xlane.f32.xlu0 %v1442
    %v1444 = vpop.xlane.xlu0 %1443
    %v1445 = vsel %vm287, %v1441, 0.0
    %1446 = vadd.xlane.f32.xlu0 %v1445
    %v1447 = vpop.xlane.xlu0 %1446
    %v1448 = vrcp.pop %v1444
    %v1449 = vrcp.pop %v1447
    %v1450 = vmul.f32 %v1439, %v1448
    %v1451 = vmul.f32 %v1441, %v1449
    %1452 = vrot.lane.b32.xlu0 %v279, 72
    %v1453 = vpop.permute.xlu0 %1452
    %v1456 = vsel %vm287, %v1450, 0
    %1458 = vmatprep.subr.mxu0 0.0
    %1459 = vmatpush1.msra.mxu0 %v1453
    %1460 = vmatprep.subr.mxu0 0.0
    %1461 = vmatpush1.msra.mxu0 0.0
    %1462 = vmatprep.subr.mxu0 0.0
    %1463 = vmatpush1.msra.mxu0 0.0
    %1464 = vmatprep.subr.mxu0 0.0
    %1465 = vmatpush1.msra.mxu0 0.0
    %1466 = vmatprep.subr.mxu0 0.0
    %1467 = vmatpush1.msra.mxu0 0.0
    %1468 = vmatprep.subr.mxu0 0.0
    %1469 = vmatpush1.msra.mxu0 0.0
    %1470 = vmatprep.subr.mxu0 0.0
    %1471 = vmatpush1.msra.mxu0 0.0
    %1472 = vmatprep.subr.mxu0 0.0
    %1473 = vmatpush1.msra.mxu0 0.0
    %1474 = vmatprep.subr.mxu0 0.0
    %1475 = vmatpush1.msra.mxu0 0.0
    %1476 = vmatprep.subr.mxu0 0.0
    %1477 = vmatpush1.msra.mxu0 0.0
    %1478 = vmatprep.subr.mxu0 0.0
    %1479 = vmatpush1.msra.mxu0 0.0
    %1480 = vmatprep.subr.mxu0 0.0
    %1481 = vmatpush1.msra.mxu0 0.0
    %1482 = vmatprep.subr.mxu0 0.0
    %1483 = vmatpush1.msra.mxu0 0.0
    %1484 = vmatprep.subr.mxu0 0.0
    %1485 = vmatpush1.msra.mxu0 0.0
    %1486 = vmatprep.subr.mxu0 0.0
    %1487 = vmatpush1.msra.mxu0 0.0
    %1488 = vmatprep.subr.mxu0 0.0
    %1489 = vmatpush1.msra.mxu0 0.0
    %1490 = vmatprep.subr.mxu0 0.0
    %1491 = vmatpush1.msra.mxu0 0.0
    %1492 = vmatprep.subr.mxu0 0.0
    %1493 = vmatpush1.msra.mxu0 0.0
    %1494 = vmatprep.subr.mxu0 0.0
    %1495 = vmatpush1.msra.mxu0 0.0
    %1496 = vmatprep.subr.mxu0 0.0
    %1497 = vmatpush1.msra.mxu0 0.0
    %1498 = vmatprep.subr.mxu0 0.0
    %1499 = vmatpush1.msra.mxu0 0.0
    %1500 = vmatprep.subr.mxu0 0.0
    %1501 = vmatpush1.msra.mxu0 0.0
    %1502 = vmatprep.subr.mxu0 0.0
    %1503 = vmatpush1.msra.mxu0 0.0
    %1504 = vmatprep.subr.mxu0 0.0
    %1505 = vmatpush1.msra.mxu0 0.0
    %1506 = vmatprep.subr.mxu0 0.0
    %1507 = vmatpush1.msra.mxu0 0.0
    %1508 = vmatprep.subr.mxu0 0.0
    %1509 = vmatpush1.msra.mxu0 0.0
    %1510 = vmatprep.subr.mxu0 0.0
    %1511 = vmatpush1.msra.mxu0 0.0
    %1512 = vmatprep.subr.mxu0 0.0
    %1513 = vmatpush1.msra.mxu0 0.0
    %1514 = vmatprep.subr.mxu0 0.0
    %1515 = vmatpush1.msra.mxu0 0.0
    %1516 = vmatprep.subr.mxu0 0.0
    %1517 = vmatpush1.msra.mxu0 0.0
    %1518 = vmatprep.subr.mxu0 0.0
    %1519 = vmatpush1.msra.mxu0 0.0
    %1520 = vmatprep.subr.mxu0 0.0
    %1521 = vmatpush1.msra.mxu0 0.0
    %1522 = vmatprep.mubr.f32.mxu0 0.0
    %1523 = vmatmul.mubr.f32.gmra.mrb[0].mxu0 %v1456
    %v1524 = vpop.f32.mrb[0].mxu0
    %v1525 = vadd.f32 0.0, %v1524
    %v1526 = vpop.f32.mrb[0].mxu0
    %1527 = vdwg.mxu0
    %1528 = vrot.lane.b32.xlu0 %v284, 72
    %v1529 = vpop.permute.xlu0 %1528
    %v1532 = vsel %vm287, %v1451, 0
    %1534 = vmatprep.subr.mxu0 0.0
    %1535 = vmatpush1.msra.mxu0 %v1529
    %1536 = vmatprep.subr.mxu0 0.0
    %1537 = vmatpush1.msra.mxu0 0.0
    %1538 = vmatprep.subr.mxu0 0.0
    %1539 = vmatpush1.msra.mxu0 0.0
    %1540 = vmatprep.subr.mxu0 0.0
    %1541 = vmatpush1.msra.mxu0 0.0
    %1542 = vmatprep.subr.mxu0 0.0
    %1543 = vmatpush1.msra.mxu0 0.0
    %1544 = vmatprep.subr.mxu0 0.0
    %1545 = vmatpush1.msra.mxu0 0.0
    %1546 = vmatprep.subr.mxu0 0.0
    %1547 = vmatpush1.msra.mxu0 0.0
    %1548 = vmatprep.subr.mxu0 0.0
    %1549 = vmatpush1.msra.mxu0 0.0
    %1550 = vmatprep.subr.mxu0 0.0
    %1551 = vmatpush1.msra.mxu0 0.0
    %1552 = vmatprep.subr.mxu0 0.0
    %1553 = vmatpush1.msra.mxu0 0.0
    %1554 = vmatprep.subr.mxu0 0.0
    %1555 = vmatpush1.msra.mxu0 0.0
    %1556 = vmatprep.subr.mxu0 0.0
    %1557 = vmatpush1.msra.mxu0 0.0
    %1558 = vmatprep.subr.mxu0 0.0
    %1559 = vmatpush1.msra.mxu0 0.0
    %1560 = vmatprep.subr.mxu0 0.0
    %1561 = vmatpush1.msra.mxu0 0.0
    %1562 = vmatprep.subr.mxu0 0.0
    %1563 = vmatpush1.msra.mxu0 0.0
    %1564 = vmatprep.subr.mxu0 0.0
    %1565 = vmatpush1.msra.mxu0 0.0
    %1566 = vmatprep.subr.mxu0 0.0
    %1567 = vmatpush1.msra.mxu0 0.0
    %1568 = vmatprep.subr.mxu0 0.0
    %1569 = vmatpush1.msra.mxu0 0.0
    %1570 = vmatprep.subr.mxu0 0.0
    %1571 = vmatpush1.msra.mxu0 0.0
    %1572 = vmatprep.subr.mxu0 0.0
    %1573 = vmatpush1.msra.mxu0 0.0
    %1574 = vmatprep.subr.mxu0 0.0
    %1575 = vmatpush1.msra.mxu0 0.0
    %1576 = vmatprep.subr.mxu0 0.0
    %1577 = vmatpush1.msra.mxu0 0.0
    %1578 = vmatprep.subr.mxu0 0.0
    %1579 = vmatpush1.msra.mxu0 0.0
    %1580 = vmatprep.subr.mxu0 0.0
    %1581 = vmatpush1.msra.mxu0 0.0
    %1582 = vmatprep.subr.mxu0 0.0
    %1583 = vmatpush1.msra.mxu0 0.0
    %1584 = vmatprep.subr.mxu0 0.0
    %1585 = vmatpush1.msra.mxu0 0.0
    %1586 = vmatprep.subr.mxu0 0.0
    %1587 = vmatpush1.msra.mxu0 0.0
    %1588 = vmatprep.subr.mxu0 0.0
    %1589 = vmatpush1.msra.mxu0 0.0
    %1590 = vmatprep.subr.mxu0 0.0
    %1591 = vmatpush1.msra.mxu0 0.0
    %1592 = vmatprep.subr.mxu0 0.0
    %1593 = vmatpush1.msra.mxu0 0.0
    %1594 = vmatprep.subr.mxu0 0.0
    %1595 = vmatpush1.msra.mxu0 0.0
    %1596 = vmatprep.subr.mxu0 0.0
    %1597 = vmatpush1.msra.mxu0 0.0
    %1598 = vmatprep.mubr.f32.mxu0 0.0
    %1599 = vmatmul.mubr.f32.gmra.mrb[0].mxu0 %v1532
    %v1600 = vpop.f32.mrb[0].mxu0
    %v1601 = vadd.f32 0.0, %v1600
    %v1602 = vpop.f32.mrb[0].mxu0
    %1603 = vdwg.mxu0
    %1606 = vrot.lane.b32.xlu0 %v865, 8
    %v1607 = vpop.permute.xlu0 %1606
    %1608 = vrot.lane.b32.xlu0 %v941, 8
    %v1609 = vpop.permute.xlu0 %1608
    %1614 = vrot.lane.b32.xlu0 %v1195, 16
    %v1615 = vpop.permute.xlu0 %1614
    %1616 = vrot.lane.b32.xlu0 %v1271, 16
    %v1617 = vpop.permute.xlu0 %1616
    %1622 = vrot.lane.b32.xlu0 %v1525, 24
    %v1623 = vpop.permute.xlu0 %1622
    %1624 = vrot.lane.b32.xlu0 %v1601, 24
    %v1625 = vpop.permute.xlu0 %1624
    %v1628 = vsel %vm287, %v535, %v1607
    %v1629 = vsel %vm287, %v611, %v1609
    %vm1630 = vcmask 130048
    %v1631 = vsel %vm1630, %v1628, %v1615
    %v1632 = vsel %vm1630, %v1629, %v1617
    %vm1633 = vcmask 195584
    %v1634 = vsel %vm1633, %v1631, %v1623
    %v1635 = vsel %vm1633, %v1632, %v1625
    %v1636 = vld [vmem:[#allocation10] sm:$0xff]
    %v1637 = vld [vmem:[#allocation10 + $0x8] sm:$0xff]
    %v1638 = vld [vmem:[#allocation10 + $0x10] sm:$0xff]
    %v1639 = vld [vmem:[#allocation10 + $0x18] sm:$0xff]
    %v1640 = vld [vmem:[%s7] sm:$0x1]
    %v1642 = vlaneseq
    %v1643 = vshrl.u32 %v1642, 7
    %v1644 = vsub.s32 0, %v1643
    %v1645 = vrot.slane %v1640, %v1644
    %v1648 = vsel %vm113, %v1634, 0
    %v1651 = vsel %vm113, %v1635, 0
    %1653 = vmatprep.subr.mxu0 0.0
    %1654 = vmatpush1.msra.mxu0 %v1636
    %1655 = vmatprep.subr.mxu0 0.0
    %1656 = vmatpush1.msra.mxu0 %v1637
    %1657 = vmatprep.subr.mxu0 0.0
    %1658 = vmatpush1.msra.mxu0 %v1638
    %1659 = vmatprep.subr.mxu0 0.0
    %1660 = vmatpush1.msra.mxu0 %v1639
    %1661 = vmatprep.subr.mxu0 0.0
    %1662 = vmatpush1.msra.mxu0 0.0
    %1663 = vmatprep.subr.mxu0 0.0
    %1664 = vmatpush1.msra.mxu0 0.0
    %1665 = vmatprep.subr.mxu0 0.0
    %1666 = vmatpush1.msra.mxu0 0.0
    %1667 = vmatprep.subr.mxu0 0.0
    %1668 = vmatpush1.msra.mxu0 0.0
    %1669 = vmatprep.subr.mxu0 0.0
    %1670 = vmatpush1.msra.mxu0 0.0
    %1671 = vmatprep.subr.mxu0 0.0
    %1672 = vmatpush1.msra.mxu0 0.0
    %1673 = vmatprep.subr.mxu0 0.0
    %1674 = vmatpush1.msra.mxu0 0.0
    %1675 = vmatprep.subr.mxu0 0.0
    %1676 = vmatpush1.msra.mxu0 0.0
    %1677 = vmatprep.subr.mxu0 0.0
    %1678 = vmatpush1.msra.mxu0 0.0
    %1679 = vmatprep.subr.mxu0 0.0
    %1680 = vmatpush1.msra.mxu0 0.0
    %1681 = vmatprep.subr.mxu0 0.0
    %1682 = vmatpush1.msra.mxu0 0.0
    %1683 = vmatprep.subr.mxu0 0.0
    %1684 = vmatpush1.msra.mxu0 0.0
    %1685 = vmatprep.subr.mxu0 0.0
    %1686 = vmatpush1.msra.mxu0 0.0
    %1687 = vmatprep.subr.mxu0 0.0
    %1688 = vmatpush1.msra.mxu0 0.0
    %1689 = vmatprep.subr.mxu0 0.0
    %1690 = vmatpush1.msra.mxu0 0.0
    %1691 = vmatprep.subr.mxu0 0.0
    %1692 = vmatpush1.msra.mxu0 0.0
    %1693 = vmatprep.subr.mxu0 0.0
    %1694 = vmatpush1.msra.mxu0 0.0
    %1695 = vmatprep.subr.mxu0 0.0
    %1696 = vmatpush1.msra.mxu0 0.0
    %1697 = vmatprep.subr.mxu0 0.0
    %1698 = vmatpush1.msra.mxu0 0.0
    %1699 = vmatprep.subr.mxu0 0.0
    %1700 = vmatpush1.msra.mxu0 0.0
    %1701 = vmatprep.subr.mxu0 0.0
    %1702 = vmatpush1.msra.mxu0 0.0
    %1703 = vmatprep.subr.mxu0 0.0
    %1704 = vmatpush1.msra.mxu0 0.0
    %1705 = vmatprep.subr.mxu0 0.0
    %1706 = vmatpush1.msra.mxu0 0.0
    %1707 = vmatprep.subr.mxu0 0.0
    %1708 = vmatpush1.msra.mxu0 0.0
    %1709 = vmatprep.subr.mxu0 0.0
    %1710 = vmatpush1.msra.mxu0 0.0
    %1711 = vmatprep.subr.mxu0 0.0
    %1712 = vmatpush1.msra.mxu0 0.0
    %1713 = vmatprep.subr.mxu0 0.0
    %1714 = vmatpush1.msra.mxu0 0.0
    %1715 = vmatprep.subr.mxu0 0.0
    %1716 = vmatpush1.msra.mxu0 0.0
    %1717 = vmatprep.mubr.f32.mxu0 0.0
    %1718 = vmatmul.mubr.f32.gmra.mrb[0].mxu0 %v1648
    %v1719 = vpop.f32.mrb[0].mxu0
    %v1720 = vadd.f32 %v1645, %v1719
    %v1721 = vpop.f32.mrb[0].mxu0
    %1722 = vmatprep.mubr.f32.mxu0 0.0
    %1723 = vmatmul.mubr.f32.gmra.mrb[0].mxu0 %v1651
    %v1724 = vpop.f32.mrb[0].mxu0
    %v1725 = vadd.f32 %v1645, %v1724
    %v1726 = vpop.f32.mrb[0].mxu0
    %1727 = vdwg.mxu0
    %1728 = vst.msk [vmem:[#allocation11] sm:$0xff] %vm113, %v1720
    %1729 = vst.msk [vmem:[#allocation11 + $0x8] sm:$0xff] %vm113, %v1725
    // Predicated region
    $region54: #{tpu_custom_call.1} parent=1 // pred_check
      _
    $region55: #{tpu_custom_call.1} parent=1 // pred_check_branch
      %1731 = sbr.rel (0) target = $region57
    $region56: #{tpu_custom_call.1} parent=1 // pred_region
      %s1733 = ssub.s32 256, 256
      %1734 = vsyncadd [#allocation4], %s1733
      %s1735 = sshll.u32 [#allocation11], 4
      %s1736 = int_to_ptr.vmem [resolvable:$true] %s1735
      %1741 = dma.vmem_to_hbm [thread:$0]  %s1736, 256, %s8, [#allocation4], 128, 128, 8
    $region57: #{tpu_custom_call.1} parent=1 // pred_fallthru
      _
    // Predicated region
    $region58: #{tpu_custom_call.1} parent=1 // pred_check
      _
    $region59: #{tpu_custom_call.1} parent=1 // pred_check_branch
      %1743 = sbr.rel (0) target = $region61
    $region60: #{tpu_custom_call.1} parent=1 // pred_region
      %1744 = dma.done [#allocation4], 256
    $region61: #{tpu_custom_call.1} parent=1 // pred_fallthru
      _
    %1745 = vsyncpa [#allocation3], 1
    %1746 = vsyncpa [#allocation6], 1
    %1747 = vsyncpa [#allocation9], 1
    %1748 = vsyncpa [#allocation4], 1

</llo_original>
